<compile_context>
chip_gen: v6e
topology: v6e:2x2x1
jax: 0.10.0
libtpu: 0.0.40
codegen_flags: <defaults>
</compile_context>

<pallas_src>
import numpy as np
import jax
import jax.numpy as jnp
from jax.experimental import pallas as pl
from jax.experimental.pallas import tpu as pltpu

EMBED = 64          # args.embedSize implied by the concatenated feature widths
GCN_LAYERS = 2      # args.gcn_layers
NEG_SLOPE = 0.01    # nn.LeakyReLU() default negative_slope

# Tile sizes (modest: graph tile bf16 = 256 KiB, x2 double-buffer, plus feature
# tiles + f32 accumulator ≪ the 32 MiB scoped-VMEM default on all of v5e/v6e/v7x).
GCN_TM = 256        # GCN row tile (parallel axis)
GCN_TK = 512        # GCN reduction tile over graph columns
PRED_TB = 128       # predict batch tile


def _round_up(x, m):
    return ((x + m - 1) // m) * m


# ----------------------------- Pallas kernels -----------------------------

def _gcn_layer_kernel(graph_ref, xk_ref, xi_ref, w_ref, b_ref, out_ref, acc_ref):
    """One GCN layer, tiled over (row tile i, reduction tile k).

    graph_ref: (TM, TK) bf16 graph tile
    xk_ref:    (TK, F)  bf16 features (RHS of G@X)
    xi_ref:    (TM, F)  f32 features row tile (for +x / *x epilogue)
    w_ref:     (2F, F)  f32 stacked [W1_t; W2_t]
    b_ref:     (1, F)   f32 (b1 + b2)
    out_ref:   (TM, 2F) f32 lane-dense slab [x_in | leaky_relu(...)]
    acc_ref:   (TM, F)  f32 scratch accumulator for G@X
    """
    k = pl.program_id(1)

    @pl.when(k == 0)
    def _():
        acc_ref[...] = jnp.zeros_like(acc_ref)

    # Accumulate graph @ features over the k reduction axis (bf16 in, f32 acc).
    acc_ref[...] += jnp.dot(graph_ref[...], xk_ref[...],
                            preferred_element_type=jnp.float32)

    @pl.when(k == pl.num_programs(1) - 1)
    def _():
        x = xi_ref[...]                                   # (TM, F) f32
        gx = acc_ref[...]                                 # (TM, F) f32
        # (graph + I) @ X == G@X + X  (selfLoop is identity).
        # Fused epilogue: [gx+x, gx*x] @ [W1; W2] + (b1+b2)  — single K=128 matmul.
        h = jnp.concatenate([gx + x, gx * x], axis=-1)    # (TM, 2F)
        s = jnp.dot(h, w_ref[...],
                    preferred_element_type=jnp.float32) + b_ref[...]
        y = jnp.where(s >= 0, s, NEG_SLOPE * s)           # LeakyReLU
        # Lane-dense 128-wide store: [input features | layer output].
        out_ref[...] = jnp.concatenate([x, y], axis=-1)


def gcn_layer(graph_bf16, feats_f32, w_stacked, b_sum, *, tm=GCN_TM, tk=GCN_TK):
    """graph_bf16: (N_pad, N_pad) bf16, feats_f32: (N_pad, F) f32.
    Returns (N_pad, 2F) f32 slab: cols [:F] = input features, [F:] = new features."""
    n_pad = graph_bf16.shape[0]
    f = feats_f32.shape[1]
    assert n_pad % tm == 0 and n_pad % tk == 0
    feats_bf16 = feats_f32.astype(jnp.bfloat16)
    return pl.pallas_call(
        _gcn_layer_kernel,
        out_shape=jax.ShapeDtypeStruct((n_pad, 2 * f), jnp.float32),
        grid=(n_pad // tm, n_pad // tk),
        in_specs=[
            pl.BlockSpec((tm, tk), lambda i, k: (i, k)),     # graph tile (bf16)
            pl.BlockSpec((tk, f), lambda i, k: (k, 0)),      # X as matmul RHS (bf16)
            pl.BlockSpec((tm, f), lambda i, k: (i, 0)),      # X row tile (f32)
            pl.BlockSpec((2 * f, f), lambda i, k: (0, 0)),   # stacked [W1_t; W2_t]
            pl.BlockSpec((1, f), lambda i, k: (0, 0)),       # b1 + b2
        ],
        out_specs=pl.BlockSpec((tm, 2 * f), lambda i, k: (i, 0)),
        scratch_shapes=[pltpu.VMEM((tm, f), jnp.float32)],
        compiler_params=pltpu.CompilerParams(
            dimension_semantics=("parallel", "arbitrary")),
    )(graph_bf16, feats_bf16, feats_f32, w_stacked, b_sum)


def _predict_kernel(u_ref, i_ref, w_ref, b_ref, out_ref):
    """transForm(user) * transForm(item), summed over features, per batch tile."""
    tb = u_ref.shape[0]
    # Stack user and item tiles into one matmul sharing the resident weights.
    h = jnp.concatenate([u_ref[...], i_ref[...]], axis=0)            # (2TB, Fin)
    r = jnp.dot(h, w_ref[...],
                preferred_element_type=jnp.float32) + b_ref[...]     # (2TB, F)
    tu = r[:tb]
    ti = r[tb:]
    s = jnp.sum(tu * ti, axis=1, keepdims=True)                      # (TB, 1)
    # Lane-dense store (128 lanes, unmasked); column 0 is sliced outside.
    out_ref[...] = jnp.broadcast_to(s, out_ref.shape)


def predict(user_emb, item_emb, w_t, b, *, tb=PRED_TB):
    bsz, fin = user_emb.shape
    b_pad = _round_up(bsz, tb)
    if b_pad != bsz:
        pad = b_pad - bsz
        user_emb = jnp.pad(user_emb, ((0, pad), (0, 0)))
        item_emb = jnp.pad(item_emb, ((0, pad), (0, 0)))
    out = pl.pallas_call(
        _predict_kernel,
        out_shape=jax.ShapeDtypeStruct((b_pad, 128), jnp.float32),
        grid=(b_pad // tb,),
        in_specs=[
            pl.BlockSpec((tb, fin), lambda i: (i, 0)),
            pl.BlockSpec((tb, fin), lambda i: (i, 0)),
            pl.BlockSpec(w_t.shape, lambda i: (0, 0)),   # weights stay resident
            pl.BlockSpec(b.shape, lambda i: (0, 0)),
        ],
        out_specs=pl.BlockSpec((tb, 128), lambda i: (i, 0)),
        compiler_params=pltpu.CompilerParams(dimension_semantics=("parallel",)),
    )(user_emb, item_emb, w_t, b)
    return out[:bsz, 0]


# ----------------------------- plain-JAX glue -----------------------------

def build_graph(rating, num_user, num_item):
    """Dense equivalent of ISKGModel.buildGraph (bipartite + symmetric-sqrt norm)."""
    R = np.zeros((num_user, num_item), dtype=np.float64)
    for u, it, v in rating:
        R[int(u), int(it)] += float(v)
    A = np.block([[np.zeros((num_user, num_user)), R],
                  [R.T, np.zeros((num_item, num_item))]])
    row = 1.0 / (np.sqrt(A.sum(axis=1)) + 1e-8)
    col = 1.0 / (np.sqrt(A.sum(axis=0)) + 1e-8)
    G = (row[:, None] * A) * col[None, :]
    return G.astype(np.float32)


def float_embedding(values, table):
    """Equivalent of ISKGModel.float_embedding with a fixed (deterministic) table."""
    v = np.asarray(values, dtype=np.float32)
    norm = (v - v.min()) / (v.max() - v.min())
    idx = np.floor(norm * 1000.0).astype(np.int32)
    return table[jnp.asarray(idx)]


class ISKGModelPallas:
    def __init__(self, key, user_feature, item_feature, social_friends, item_cats, rating):
        self.user_feature = user_feature
        self.item_feature = item_feature
        self.social_friends = social_friends   # (U, K) int friend ids (pre-grouped)
        self.item_cats = item_cats             # (I, K) int category ids (pre-grouped)
        self.num_user = len(np.unique(rating[:, 0]))
        self.num_item = len(np.unique(rating[:, 1]))
        self.num_nodes = self.num_user + self.num_item

        # Build + normalize graph in numpy, then zero-pad to the GCN tile grid and
        # cast to bf16 once (halves the dominant N^2 HBM stream; f32 accumulation
        # in-kernel keeps deviations ~1e-3 relative).
        g = build_graph(rating, self.num_user, self.num_item)
        self.n_pad = _round_up(self.num_nodes, max(GCN_TM, GCN_TK))
        g_pad = np.zeros((self.n_pad, self.n_pad), dtype=np.float32)
        g_pad[:self.num_nodes, :self.num_nodes] = g
        self.graph_bf16 = jnp.asarray(g_pad, dtype=jnp.bfloat16)

        keys = jax.random.split(key, 32)
        ki = iter(keys)

        def tbl(shape, scale=0.1):
            return (scale * jax.random.normal(next(ki), shape)).astype(jnp.float32)

        # Embedding tables (shapes follow the nn.Embedding definitions).
        self.user_id_tbl = tbl((int(user_feature['user_id'].max()) + 1, 32))
        self.useful_tbl = tbl((int(user_feature['useful'].max()) + 1, 4))
        self.funny_tbl = tbl((int(user_feature['funny'].max()) + 1, 4))
        self.cool_tbl = tbl((int(user_feature['cool'].max()) + 1, 4))
        self.fans_tbl = tbl((int(user_feature['fans'].max()) + 1, 4))
        self.user2_id_tbl = tbl((int(social_friends.max()) + 1, 4))
        self.knowledge_tbl = tbl((int(item_feature['business_id'].max()) + 1, 8))
        self.item_id_tbl = tbl((int(item_feature['business_id'].max()) + 1, 32))
        self.review_cnt_tbl = tbl((int(item_feature['review_count'].max()) + 1, 12))
        self.user_stars_tbl = tbl((1001, 12))
        self.item_stars_tbl = tbl((1001, 12))

        # GCN layer weights, pre-fused for the single K=128 epilogue matmul:
        #   W_stacked = [W1_t; W2_t]  (2F, F),   b = b1 + b2  (1, F)
        self.gcn_params = []
        for _ in range(GCN_LAYERS):
            w1 = tbl((EMBED, EMBED)); b1 = tbl((1, EMBED))
            w2 = tbl((EMBED, EMBED)); b2 = tbl((1, EMBED))
            self.gcn_params.append((jnp.concatenate([w1, w2], axis=0), b1 + b2))

        # transForm: Linear(EMBED*(L+1) -> EMBED), stored pre-transposed.
        self.transform_w_t = tbl((EMBED * (GCN_LAYERS + 1), EMBED))
        self.transform_b = tbl((1, EMBED))

    def get_feature(self):
        uf = self.user_feature
        user_id = self.user_id_tbl[jnp.asarray(uf['user_id'])]
        useful = self.useful_tbl[jnp.asarray(uf['useful'])]
        funny = self.funny_tbl[jnp.asarray(uf['funny'])]
        cool = self.cool_tbl[jnp.asarray(uf['cool'])]
        fans = self.fans_tbl[jnp.asarray(uf['fans'])]
        avg_stars = float_embedding(uf['average_stars'], self.user_stars_tbl)
        social = self.user2_id_tbl[jnp.asarray(self.social_friends)].mean(axis=1)
        user_emb = jnp.concatenate(
            [user_id, useful, funny, cool, fans, avg_stars, social], axis=1)

        itf = self.item_feature
        item_id = self.item_id_tbl[jnp.asarray(itf['business_id'])]
        item_stars = float_embedding(itf['stars'], self.item_stars_tbl)
        review_cnt = self.review_cnt_tbl[jnp.asarray(itf['review_count'])]
        knowledge = self.knowledge_tbl[jnp.asarray(self.item_cats)].mean(axis=1)
        item_emb = jnp.concatenate([item_id, item_stars, review_cnt, knowledge], axis=1)

        return jnp.concatenate([user_emb, item_emb], axis=0).astype(jnp.float32)

    def forward(self, users, items):
        feats = self.get_feature()                            # (N, 64)
        n = feats.shape[0]
        # Zero-pad node rows once; padded rows never feed real rows (graph padding
        # is zero) and are never read back.
        x = jnp.zeros((self.n_pad, EMBED), jnp.float32).at[:n].set(feats)
        embs = [x]
        for (w_st, b_st) in self.gcn_params:
            slab = gcn_layer(self.graph_bf16, x, w_st, b_st)  # (N_pad, 128) = [x, x_new]
            x = slab[:, EMBED:]
            embs.append(x)
        final_emb = jnp.concatenate(embs, axis=1)             # (N_pad, 64*(L+1))
        user_emb = final_emb[:self.num_user][users]           # (B, 192)
        item_emb = final_emb[self.num_user:self.num_user + self.num_item][items]
        return predict(user_emb, item_emb, self.transform_w_t, self.transform_b)


# --------------------------------- main ----------------------------------

if __name__ == "__main__":
    U, I = 8, 8
    rng = np.random.default_rng(0)

    user_feature = {
        'user_id': np.arange(U, dtype=np.int32),
        'useful': rng.integers(0, 5, U).astype(np.int32),
        'funny': rng.integers(0, 5, U).astype(np.int32),
        'cool': rng.integers(0, 5, U).astype(np.int32),
        'fans': rng.integers(0, 5, U).astype(np.int32),
        'average_stars': rng.uniform(1.0, 5.0, U).astype(np.float32),
    }
    item_feature = {
        'business_id': np.arange(I, dtype=np.int32),
        'stars': rng.uniform(1.0, 5.0, I).astype(np.float32),
        'review_count': rng.integers(0, 10, I).astype(np.int32),
    }
    social_friends = rng.integers(0, U, (U, 2)).astype(np.int32)   # 2 friends per user
    item_cats = rng.integers(0, I, (I, 2)).astype(np.int32)        # 2 knowledge entities per item

    # rating triplets (user_id, business_id, stars) covering every user and item
    rating = np.array(
        [[u, int(rng.integers(0, I)), int(rng.integers(1, 6))] for u in range(U)]
        + [[int(rng.integers(0, U)), it, int(rng.integers(1, 6))] for it in range(I)],
        dtype=np.int64)

    model = ISKGModelPallas(jax.random.PRNGKey(0), user_feature, item_feature,
                            social_friends, item_cats, rating)

    users = jnp.arange(U, dtype=jnp.int32)
    items = jnp.arange(I - 1, -1, -1, dtype=jnp.int32)

    pred = model.forward(users, items)
    pred = jax.block_until_ready(pred)
    assert pred.shape == (U,) and bool(jnp.all(jnp.isfinite(pred)))
    print("KERNEL_OK")
</pallas_src>

<mosaic_0001>
module attributes {stable_mosaic.version = 11 : i64} {
  func.func @_gcn_layer_kernel(%arg0: i32, %arg1: i32, %arg2: memref<256x512xbf16, #tpu.memory_space<vmem>>, %arg3: memref<512x64xbf16, #tpu.memory_space<vmem>>, %arg4: memref<256x64xf32, #tpu.memory_space<vmem>>, %arg5: memref<128x64xf32, #tpu.memory_space<vmem>>, %arg6: memref<1x64xf32, #tpu.memory_space<vmem>>, %arg7: memref<256x128xf32, #tpu.memory_space<vmem>>, %arg8: memref<256x64xf32, #tpu.memory_space<vmem>>) attributes {dimension_semantics = [#tpu.dimension_semantics<parallel>, #tpu.dimension_semantics<arbitrary>], iteration_bounds = array<i64: 2, 1>, scalar_prefetch = 0 : i64, scratch_operands = 1 : i64, tpu.core_type = #tpu.core_type<tc>, window_params = [{transform_indices = @transform_0, window_bounds = array<i64: 256, 512>}, {transform_indices = @transform_1, window_bounds = array<i64: 512, 64>}, {transform_indices = @transform_2, window_bounds = array<i64: 256, 64>}, {pipeline_mode = #tpu.pipeline_mode<synchronous>, transform_indices = @transform_3, window_bounds = array<i64: 128, 64>}, {pipeline_mode = #tpu.pipeline_mode<synchronous>, transform_indices = @transform_4, window_bounds = array<i64: 1, 64>}, {transform_indices = @transform_5, window_bounds = array<i64: 256, 128>}]} {
    %c0_i32 = arith.constant 0 : i32
    %0 = arith.cmpi eq, %arg1, %c0_i32 : i32
    %1 = arith.extui %0 : i1 to i32
    %c0_i32_0 = arith.constant 0 : i32
    %2 = arith.cmpi ne, %1, %c0_i32_0 : i32
    scf.if %2 {
      %cst_10 = arith.constant 0.000000e+00 : f32
      %12 = vector.broadcast %cst_10 : f32 to vector<256x64xf32>
      %c0_11 = arith.constant 0 : index
      %c0_12 = arith.constant 0 : index
      %13 = vector.load %arg8[%c0_11, %c0_12] : memref<256x64xf32, #tpu.memory_space<vmem>>, vector<256x64xf32>
      tpu.vector_store %arg8[%c0_11, %c0_12], %12 {strides = array<i32>} : memref<256x64xf32, #tpu.memory_space<vmem>>, vector<256x64xf32>,
    } else {
    }
    %c0 = arith.constant 0 : index
    %c0_1 = arith.constant 0 : index
    %3 = vector.load %arg8[%c0, %c0_1] : memref<256x64xf32, #tpu.memory_space<vmem>>, vector<256x64xf32>
    %c0_2 = arith.constant 0 : index
    %c0_3 = arith.constant 0 : index
    %4 = vector.load %arg2[%c0_2, %c0_3] : memref<256x512xbf16, #tpu.memory_space<vmem>>, vector<256x512xbf16>
    %c0_4 = arith.constant 0 : index
    %c0_5 = arith.constant 0 : index
    %5 = vector.load %arg3[%c0_4, %c0_5] : memref<512x64xbf16, #tpu.memory_space<vmem>>, vector<512x64xbf16>
    %cst = arith.constant dense<0.000000e+00> : vector<256x64xf32>
    %6 = tpu.matmul %4, %5, %cst {dimension_numbers = #tpu.dot_dimension_numbers<[1], [0], [0], [1], [0, 0, 1, 1], [], []>} : vector<256x512xbf16>, vector<512x64xbf16>, vector<256x64xf32> -> vector<256x64xf32>
    %7 = arith.addf %3, %6 : vector<256x64xf32>
    %c0_6 = arith.constant 0 : index
    %c0_7 = arith.constant 0 : index
    %8 = vector.load %arg8[%c0_6, %c0_7] : memref<256x64xf32, #tpu.memory_space<vmem>>, vector<256x64xf32>
    tpu.vector_store %arg8[%c0_6, %c0_7], %7 {strides = array<i32>} : memref<256x64xf32, #tpu.memory_space<vmem>>, vector<256x64xf32>,
    %c0_i32_8 = arith.constant 0 : i32
    %9 = arith.cmpi eq, %arg1, %c0_i32_8 : i32
    %10 = arith.extui %9 : i1 to i32
    %c0_i32_9 = arith.constant 0 : i32
    %11 = arith.cmpi ne, %10, %c0_i32_9 : i32
    scf.if %11 {
      %c0_10 = arith.constant 0 : index
      %c0_11 = arith.constant 0 : index
      %12 = vector.load %arg4[%c0_10, %c0_11] : memref<256x64xf32, #tpu.memory_space<vmem>>, vector<256x64xf32>
      %c0_12 = arith.constant 0 : index
      %c0_13 = arith.constant 0 : index
      %13 = vector.load %arg8[%c0_12, %c0_13] : memref<256x64xf32, #tpu.memory_space<vmem>>, vector<256x64xf32>
      %14 = arith.addf %13, %12 : vector<256x64xf32>
      %15 = arith.mulf %13, %12 : vector<256x64xf32>
      %16 = tpu.concatenate %14, %15 in 1 : vector<256x64xf32>, vector<256x64xf32> -> vector<256x128xf32>
      %c0_14 = arith.constant 0 : index
      %c0_15 = arith.constant 0 : index
      %17 = vector.load %arg5[%c0_14, %c0_15] : memref<128x64xf32, #tpu.memory_space<vmem>>, vector<128x64xf32>
      %cst_16 = arith.constant dense<0.000000e+00> : vector<256x64xf32>
      %18 = tpu.matmul %16, %17, %cst_16 {dimension_numbers = #tpu.dot_dimension_numbers<[1], [0], [0], [1], [0, 0, 1, 1], [], []>} : vector<256x128xf32>, vector<128x64xf32>, vector<256x64xf32> -> vector<256x64xf32>
      %c0_17 = arith.constant 0 : index
      %c0_18 = arith.constant 0 : index
      %19 = vector.load %arg6[%c0_17, %c0_18] : memref<1x64xf32, #tpu.memory_space<vmem>>, vector<1x64xf32>
      %20 = vector.broadcast %19 : vector<1x64xf32> to vector<256x64xf32>
      %21 = arith.addf %18, %20 : vector<256x64xf32>
      %cst_19 = arith.constant 0.000000e+00 : f32
      %22 = vector.broadcast %cst_19 : f32 to vector<256x64xf32>
      %23 = arith.cmpf oge, %21, %22 : vector<256x64xf32>
      %cst_20 = arith.constant 0.00999999977 : f32
      %24 = vector.broadcast %cst_20 : f32 to vector<256x64xf32>
      %25 = arith.mulf %24, %21 : vector<256x64xf32>
      %26 = arith.select %23, %21, %25 : vector<256x64xi1>, vector<256x64xf32>
      %27 = tpu.concatenate %12, %26 in 1 : vector<256x64xf32>, vector<256x64xf32> -> vector<256x128xf32>
      %c0_21 = arith.constant 0 : index
      %c0_22 = arith.constant 0 : index
      %28 = vector.load %arg7[%c0_21, %c0_22] : memref<256x128xf32, #tpu.memory_space<vmem>>, vector<256x128xf32>
      tpu.vector_store %arg7[%c0_21, %c0_22], %27 {strides = array<i32>} : memref<256x128xf32, #tpu.memory_space<vmem>>, vector<256x128xf32>,
    } else {
    }
    return
  }
  func.func @transform_0(%arg0: i32, %arg1: i32) -> (i32, i32) {
    %c0_i32 = arith.constant 0 : i32
    return %arg0, %arg1 : i32, i32
  }
  func.func @transform_1(%arg0: i32, %arg1: i32) -> (i32, i32) {
    %c0_i32 = arith.constant 0 : i32
    %c0_i32_0 = arith.constant 0 : i32
    return %arg1, %c0_i32 : i32, i32
  }
  func.func @transform_2(%arg0: i32, %arg1: i32) -> (i32, i32) {
    %c0_i32 = arith.constant 0 : i32
    %c0_i32_0 = arith.constant 0 : i32
    return %arg0, %c0_i32 : i32, i32
  }
  func.func @transform_3(%arg0: i32, %arg1: i32) -> (i32, i32) {
    %c0_i32 = arith.constant 0 : i32
    %c0_i32_0 = arith.constant 0 : i32
    %c0_i32_1 = arith.constant 0 : i32
    return %c0_i32, %c0_i32_0 : i32, i32
  }
  func.func @transform_4(%arg0: i32, %arg1: i32) -> (i32, i32) {
    %c0_i32 = arith.constant 0 : i32
    %c0_i32_0 = arith.constant 0 : i32
    %c0_i32_1 = arith.constant 0 : i32
    return %c0_i32, %c0_i32_0 : i32, i32
  }
  func.func @transform_5(%arg0: i32, %arg1: i32) -> (i32, i32) {
    %c0_i32 = arith.constant 0 : i32
    %c0_i32_0 = arith.constant 0 : i32
    return %arg0, %c0_i32 : i32, i32
  }
}

</mosaic_0001>

<llo_original>
// kernel: tpu_custom_call.1
$region0: #{tpu_custom_call.1}
  #allocation0 [shape = 'u32[]', space=smem, size = 0x4, offset = 0x4, fixed_abs, tag = 'smem constant byte address 0x4 - core index']
  #allocation1 [shape = 'u32[144,128]{1,0:T(1,128)}', space=vmem, size = 0x12000, scoped, tag = 'internal scratch']
  #allocation2 [shape = 'f32[256,64]{1,0:T(8,128)}', space=vmem, size = 0x20000, scoped, tag = 'scratch operand']
  %s0 = inlined_call_operand.vmem [shape: bf16[512,512], index: 0, kind: input, shape index: {}]
  %s1 = inlined_call_operand.vmem [shape: bf16[512,64], index: 1, kind: input, shape index: {}]
  %s2 = inlined_call_operand.vmem [shape: f32[512,64], index: 2, kind: input, shape index: {}]
  %s3 = inlined_call_operand.vmem [shape: f32[128,64], index: 3, kind: input, shape index: {}]
  %s4 = inlined_call_operand.vmem [shape: f32[1,64], index: 4, kind: input, shape index: {}]
  %s5 = inlined_call_operand.hbm [shape: f32[512,128], index: 5, kind: output, shape index: {}]
  %s6 = sld [smem:[#allocation0]]
  $region61: #{tpu_custom_call.1} parent=0
    _
  %s8 = ssub.s32 1, %s6
  %s9 = scalar_select 0, %s8, %s6
  $region1: #{tpu_custom_call.1} parent=0
    #allocation3 [shape = 'u8[262144]{0}', space=vmem, size = 0x40000, scoped, tag = 'output window, operand 0']
    #allocation4 [shape = 's32[2]{0}', space=sflag, size = 0x8, scoped, tag = 'scoped memory for tpu_custom_call.1']
    %10 = vsyncpa [#allocation4], 0
    %s11 = scalar_lea.sflag [#allocation4], 1
    %12 = vsyncpa %s11, 0
    loop: start=0, step=1, limit=4
    $region2: #{tpu_custom_call.1} parent=1 // loop_pre_header
      _
    $region3: #{tpu_custom_call.1} parent=1 // loop_header
      %s14 = sphi 0, %s18
      %p15 = scmp.ge.s32.totalorder %s14, 4
      %s21 = sphi 0, %s33
      %s22 = sphi 0, %s29
      %s23 = sphi 0, %s21
      %s24 = sphi 0, %s22
      %s25 = sphi 0, %s23
      %s26 = sphi 0, %s24
      %s38 = sphi 0, %s40
      %s41 = sphi 0, %s38
      %s42 = sphi 0, %s41
      %s58 = sphi 0, %s42
      %s64 = sphi 0, %s66
      %s67 = sphi 0, %s64
      %s68 = sphi 0, %s67
      %s84 = sphi 0, %s68
      %s90 = sphi 0, %s92
      %s93 = sphi 0, %s90
      %s94 = sphi 0, %s93
      %s110 = sphi 0, %s94
      %s114 = sphi 0, %s114
      %s116 = sphi 0, %s114
      %s117 = sphi 0, %s116
      %s131 = sphi 0, %s117
      %s135 = sphi 0, %s135
      %s137 = sphi 0, %s135
      %s138 = sphi 0, %s137
      %s152 = sphi 0, %s138
      %s158 = sphi 0, %s160
      %s161 = sphi 0, %s158
      %s162 = sphi 0, %s161
      %s178 = sphi 0, %s162
    $region4: #{tpu_custom_call.1} parent=1 // loop_header_branch
      %17 = sbr.rel (%p15) target = $region8
    $region5: #{tpu_custom_call.1} parent=1 // loop_body
      %s19 = ssub.s32 %s14, 1
      %s20 = ssub.s32 %s14, 2
      %s27 = sadd.s32 1, %s22
      %p28 = scmp.ge.s32.totalorder %s27, 1
      %s29 = scalar_select %p28, 0, %s27
      %s30 = sadd.s32 1, %s21
      %s31 = scalar_select %p28, %s30, %s21
      %p32 = scmp.ge.s32.totalorder %s31, 2
      %s33 = scalar_select %p32, 0, %s31
      %s34 = ssub.s32 %s21, %s33
      %s35 = ssub.s32 %s22, %s29
      %s36 = sor.u32 %s34, %s35
      %p37 = scmp.eq.s32.totalorder %s36, 0
      %s39 = sadd.s32 %s38, 1
      %s40 = scalar_select %p37, %s38, %s39
      %p43 = pneg %p37
      %p44 = scmp.eq.s32.totalorder %s14, 1
      %p45 = por %p43, %p44
      %p46 = scmp.ne.s32.totalorder %s38, %s41
      %p47 = scmp.eq.s32.totalorder %s14, 0
      %p48 = por %p46, %p47
      %p49 = scmp.ne.s32.totalorder %s38, %s41
      %p50 = scmp.eq.s32.totalorder %s19, 1
      %p51 = por %p49, %p50
      %p52 = scmp.ne.s32.totalorder %s41, %s42
      %p53 = scmp.eq.s32.totalorder %s19, 0
      %p54 = por %p52, %p53
      %p55 = scmp.ne.s32.totalorder %s41, %s42
      %p56 = scmp.eq.s32.totalorder %s20, 1
      %p57 = por %p55, %p56
      %p59 = scmp.ne.s32.totalorder %s42, %s58
      %p60 = scmp.eq.s32.totalorder %s20, 0
      %p61 = por %p59, %p60
      %s62 = ssub.s32 %s22, %s29
      %p63 = scmp.eq.s32.totalorder %s62, 0
      %s65 = sadd.s32 %s64, 1
      %s66 = scalar_select %p63, %s64, %s65
      %p69 = pneg %p63
      %p70 = scmp.eq.s32.totalorder %s14, 1
      %p71 = por %p69, %p70
      %p72 = scmp.ne.s32.totalorder %s64, %s67
      %p73 = scmp.eq.s32.totalorder %s14, 0
      %p74 = por %p72, %p73
      %p75 = scmp.ne.s32.totalorder %s64, %s67
      %p76 = scmp.eq.s32.totalorder %s19, 1
      %p77 = por %p75, %p76
      %p78 = scmp.ne.s32.totalorder %s67, %s68
      %p79 = scmp.eq.s32.totalorder %s19, 0
      %p80 = por %p78, %p79
      %p81 = scmp.ne.s32.totalorder %s67, %s68
      %p82 = scmp.eq.s32.totalorder %s20, 1
      %p83 = por %p81, %p82
      %p85 = scmp.ne.s32.totalorder %s68, %s84
      %p86 = scmp.eq.s32.totalorder %s20, 0
      %p87 = por %p85, %p86
      %s88 = ssub.s32 %s21, %s33
      %p89 = scmp.eq.s32.totalorder %s88, 0
      %s91 = sadd.s32 %s90, 1
      %s92 = scalar_select %p89, %s90, %s91
      %p95 = pneg %p89
      %p96 = scmp.eq.s32.totalorder %s14, 1
      %p97 = por %p95, %p96
      %p98 = scmp.ne.s32.totalorder %s90, %s93
      %p99 = scmp.eq.s32.totalorder %s14, 0
      %p100 = por %p98, %p99
      %p101 = scmp.ne.s32.totalorder %s90, %s93
      %p102 = scmp.eq.s32.totalorder %s19, 1
      %p103 = por %p101, %p102
      %p104 = scmp.ne.s32.totalorder %s93, %s94
      %p105 = scmp.eq.s32.totalorder %s19, 0
      %p106 = por %p104, %p105
      %p107 = scmp.ne.s32.totalorder %s93, %s94
      %p108 = scmp.eq.s32.totalorder %s20, 1
      %p109 = por %p107, %p108
      %p111 = scmp.ne.s32.totalorder %s94, %s110
      %p112 = scmp.eq.s32.totalorder %s20, 0
      %p113 = por %p111, %p112
      %s115 = sadd.s32 %s114, 1
      %p118 = scmp.eq.s32.totalorder %s14, 1
      %p119 = scmp.ne.s32.totalorder %s114, %s116
      %p120 = scmp.eq.s32.totalorder %s14, 0
      %p121 = por %p119, %p120
      %p122 = scmp.ne.s32.totalorder %s114, %s116
      %p123 = scmp.eq.s32.totalorder %s19, 1
      %p124 = por %p122, %p123
      %p125 = scmp.ne.s32.totalorder %s116, %s117
      %p126 = scmp.eq.s32.totalorder %s19, 0
      %p127 = por %p125, %p126
      %p128 = scmp.ne.s32.totalorder %s116, %s117
      %p129 = scmp.eq.s32.totalorder %s20, 1
      %p130 = por %p128, %p129
      %p132 = scmp.ne.s32.totalorder %s117, %s131
      %p133 = scmp.eq.s32.totalorder %s20, 0
      %p134 = por %p132, %p133
      %s136 = sadd.s32 %s135, 1
      %p139 = scmp.eq.s32.totalorder %s14, 1
      %p140 = scmp.ne.s32.totalorder %s135, %s137
      %p141 = scmp.eq.s32.totalorder %s14, 0
      %p142 = por %p140, %p141
      %p143 = scmp.ne.s32.totalorder %s135, %s137
      %p144 = scmp.eq.s32.totalorder %s19, 1
      %p145 = por %p143, %p144
      %p146 = scmp.ne.s32.totalorder %s137, %s138
      %p147 = scmp.eq.s32.totalorder %s19, 0
      %p148 = por %p146, %p147
      %p149 = scmp.ne.s32.totalorder %s137, %s138
      %p150 = scmp.eq.s32.totalorder %s20, 1
      %p151 = por %p149, %p150
      %p153 = scmp.ne.s32.totalorder %s138, %s152
      %p154 = scmp.eq.s32.totalorder %s20, 0
      %p155 = por %p153, %p154
      %s156 = ssub.s32 %s21, %s33
      %p157 = scmp.eq.s32.totalorder %s156, 0
      %s159 = sadd.s32 %s158, 1
      %s160 = scalar_select %p157, %s158, %s159
      %p163 = pneg %p157
      %p164 = scmp.eq.s32.totalorder %s14, 1
      %p165 = por %p163, %p164
      %p166 = scmp.ne.s32.totalorder %s158, %s161
      %p167 = scmp.eq.s32.totalorder %s14, 0
      %p168 = por %p166, %p167
      %p169 = scmp.ne.s32.totalorder %s158, %s161
      %p170 = scmp.eq.s32.totalorder %s19, 1
      %p171 = por %p169, %p170
      %p172 = scmp.ne.s32.totalorder %s161, %s162
      %p173 = scmp.eq.s32.totalorder %s19, 0
      %p174 = por %p172, %p173
      %p175 = scmp.ne.s32.totalorder %s161, %s162
      %p176 = scmp.eq.s32.totalorder %s20, 1
      %p177 = por %p175, %p176
      %p179 = scmp.ne.s32.totalorder %s162, %s178
      %p180 = scmp.eq.s32.totalorder %s20, 0
      %p181 = por %p179, %p180
      %p182 = scmp.le.s32.totalorder 1, %s14
      %p183 = scmp.lt.s32.totalorder %s14, 3
      %p184 = pnand %p182, %p183
      %p185 = pneg %p184
      // Predicated region
      $region9: #{tpu_custom_call.1} parent=5 // pred_check
        _
      $region10: #{tpu_custom_call.1} parent=5 // pred_check_branch
        %187 = sbr.rel (%p184) target = $region12
      $region11: #{tpu_custom_call.1} parent=5 // pred_region
        %s188 = ssub.s32 %s14, 1
        // Predicated region
        $region13: #{tpu_custom_call.1} parent=11 // pred_check
          %p189 = pneg %p80
        $region14: #{tpu_custom_call.1} parent=11 // pred_check_branch
          %191 = sbr.rel (%p189) target = $region16
        $region15: #{tpu_custom_call.1} parent=11 // pred_region
          %s192 = smul.u32 64, %s24
          %p193 = scmp.lt.s32.totalorder %s192, 63
          %s194 = scalar_select %p193, %s192, 63
          %s195 = smul.addr %s194, 4
          %s196 = scalar_lea.vmem %s1, %s195
          %s197 = smul.u32 64, %s24
        $region16: #{tpu_custom_call.1} parent=11 // pred_fallthru
          _
        // Predicated region
        $region17: #{tpu_custom_call.1} parent=11 // pred_check
          %p198 = pneg %p127
        $region18: #{tpu_custom_call.1} parent=11 // pred_check_branch
          %200 = sbr.rel (%p198) target = $region20
        $region19: #{tpu_custom_call.1} parent=11 // pred_region
          _
        $region20: #{tpu_custom_call.1} parent=11 // pred_fallthru
          _
        // Predicated region
        $region21: #{tpu_custom_call.1} parent=11 // pred_check
          %p201 = pneg %p148
        $region22: #{tpu_custom_call.1} parent=11 // pred_check_branch
          %203 = sbr.rel (%p201) target = $region24
        $region23: #{tpu_custom_call.1} parent=11 // pred_region
          _
        $region24: #{tpu_custom_call.1} parent=11 // pred_fallthru
          _
      $region12: #{tpu_custom_call.1} parent=5 // pred_fallthru
        _
      %p204 = scmp.lt.s32.totalorder %s14, 2
      // Predicated region
      $region25: #{tpu_custom_call.1} parent=5 // pred_check
        %p205 = pneg %p204
      $region26: #{tpu_custom_call.1} parent=5 // pred_check_branch
        %207 = sbr.rel (%p205) target = $region28
      $region27: #{tpu_custom_call.1} parent=5 // pred_region
        // Predicated region
        $region29: #{tpu_custom_call.1} parent=27 // pred_check
          %p208 = pneg %p48
        $region30: #{tpu_custom_call.1} parent=27 // pred_check_branch
          %210 = sbr.rel (%p208) target = $region32
        $region31: #{tpu_custom_call.1} parent=27 // pred_region
          %s211 = smul.u32 32, %s21
          %s212 = smul.u32 4, %s22
          %p213 = scmp.lt.s32.totalorder %s211, 63
          %s214 = scalar_select %p213, %s211, 63
          %p215 = scmp.lt.s32.totalorder %s212, 3
          %s216 = scalar_select %p215, %s212, 3
          %s217 = smul.addr %s214, 4
          %s218 = sadd.s32 %s216, %s217
          %s219 = smul.addr %s218, 4
          %s220 = scalar_lea.vmem %s0, %s219
          %s221 = smul.u32 32, %s21
          %s222 = smul.u32 4, %s22
        $region32: #{tpu_custom_call.1} parent=27 // pred_fallthru
          _
        // Predicated region
        $region33: #{tpu_custom_call.1} parent=27 // pred_check
          %p223 = pneg %p100
        $region34: #{tpu_custom_call.1} parent=27 // pred_check_branch
          %225 = sbr.rel (%p223) target = $region36
        $region35: #{tpu_custom_call.1} parent=27 // pred_region
          %s226 = smul.u32 32, %s21
          %p227 = scmp.lt.s32.totalorder %s226, 63
          %s228 = scalar_select %p227, %s226, 63
          %s229 = smul.addr %s228, 8
          %s230 = scalar_lea.vmem %s2, %s229
          %s231 = smul.u32 32, %s21
        $region36: #{tpu_custom_call.1} parent=27 // pred_fallthru
          _
      $region28: #{tpu_custom_call.1} parent=5 // pred_fallthru
        _
      %p232 = scmp.le.s32.totalorder 1, %s14
      %p233 = scmp.lt.s32.totalorder %s14, 3
      %p234 = pnand %p232, %p233
      %p235 = pneg %p234
      // Predicated region
      $region37: #{tpu_custom_call.1} parent=5 // pred_check
        _
      $region38: #{tpu_custom_call.1} parent=5 // pred_check_branch
        %237 = sbr.rel (%p234) target = $region40
      $region39: #{tpu_custom_call.1} parent=5 // pred_region
        %s238 = ssub.s32 %s14, 1
        %s239 = smul.u32 32, %s23
        %s240 = smul.u32 4, %s24
        %p241 = scmp.lt.s32.totalorder %s239, 63
        %s242 = scalar_select %p241, %s239, 63
        %p243 = scmp.lt.s32.totalorder %s240, 3
        %s244 = scalar_select %p243, %s240, 3
        %s245 = smul.addr %s242, 4
        %s246 = sadd.s32 %s244, %s245
        %s247 = smul.addr %s246, 4
        %s248 = scalar_lea.vmem %s0, %s247
        %p249 = pneg %p54
        %p250 = pneg %p51
        %s251 = smul.u32 64, %s24
        %p252 = scmp.lt.s32.totalorder %s251, 63
        %s253 = scalar_select %p252, %s251, 63
        %s254 = smul.addr %s253, 4
        %s255 = scalar_lea.vmem %s1, %s254
        %p256 = pneg %p80
        %p257 = pneg %p77
        %s258 = smul.u32 32, %s23
        %p259 = scmp.lt.s32.totalorder %s258, 63
        %s260 = scalar_select %p259, %s258, 63
        %s261 = smul.addr %s260, 8
        %s262 = scalar_lea.vmem %s2, %s261
        %p263 = pneg %p106
        %p264 = pneg %p103
        %p265 = pneg %p127
        %p266 = pneg %p124
        %p267 = pneg %p148
        %p268 = pneg %p145
        %p269 = pneg %p174
        %p270 = pneg %p171
        %s271 = sand.u32 %s161, 1
        %s272 = scalar_lea.sflag [#allocation4], %s271
        %s273 = sand.u32 %s161, 1
        %s274 = smul.addr %s273, 256
        %s275 = scalar_lea.vmem [#allocation3], %s274
        %s276 = smul.u32 32, %s23
        %s277 = smul.u32 4, %s24
        %p278 = scmp.lt.s32.totalorder %s276, 63
        %s279 = scalar_select %p278, %s276, 63
        %p280 = scmp.lt.s32.totalorder %s277, 3
        %s281 = scalar_select %p280, %s277, 3
        %s282 = smul.addr %s279, 4
        %s283 = sadd.s32 %s281, %s282
        %s284 = smul.addr %s283, 4
        %s285 = scalar_lea.vmem %s0, %s284
        %s286 = smul.u32 32, %s23
        %s287 = smul.u32 4, %s24
        %s288 = smul.u32 64, %s24
        %p289 = scmp.lt.s32.totalorder %s288, 63
        %s290 = scalar_select %p289, %s288, 63
        %s291 = smul.addr %s290, 4
        %s292 = scalar_lea.vmem %s1, %s291
        %s293 = smul.u32 64, %s24
        %s294 = smul.u32 32, %s23
        %p295 = scmp.lt.s32.totalorder %s294, 63
        %s296 = scalar_select %p295, %s294, 63
        %s297 = smul.addr %s296, 8
        %s298 = scalar_lea.vmem %s2, %s297
        %s299 = smul.u32 32, %s23
        %s300 = smul.u32 32, %s23
        %p302 = scmp.eq.s32.totalorder %s24, 0
        // Predicated region
        $region41: #{tpu_custom_call.1} parent=39 // pred_check
          %p303 = pneg %p302
        $region42: #{tpu_custom_call.1} parent=39 // pred_check_branch
          %305 = sbr.rel (%p303) target = $region44
        $region43: #{tpu_custom_call.1} parent=39 // pred_region
          %vm306 = vcmask 523264
          %307 = vst.msk [vmem:[#allocation2] sm:$0xff] %vm306, 0.0
          %308 = vst.msk [vmem:[#allocation2 + $0x8] sm:$0xff] %vm306, 0.0
          %309 = vst.msk [vmem:[#allocation2 + $0x10] sm:$0xff] %vm306, 0.0
          %310 = vst.msk [vmem:[#allocation2 + $0x18] sm:$0xff] %vm306, 0.0
          %311 = vst.msk [vmem:[#allocation2 + $0x20] sm:$0xff] %vm306, 0.0
          %312 = vst.msk [vmem:[#allocation2 + $0x28] sm:$0xff] %vm306, 0.0
          %313 = vst.msk [vmem:[#allocation2 + $0x30] sm:$0xff] %vm306, 0.0
          %314 = vst.msk [vmem:[#allocation2 + $0x38] sm:$0xff] %vm306, 0.0
          %315 = vst.msk [vmem:[#allocation2 + $0x40] sm:$0xff] %vm306, 0.0
          %316 = vst.msk [vmem:[#allocation2 + $0x48] sm:$0xff] %vm306, 0.0
          %317 = vst.msk [vmem:[#allocation2 + $0x50] sm:$0xff] %vm306, 0.0
          %318 = vst.msk [vmem:[#allocation2 + $0x58] sm:$0xff] %vm306, 0.0
          %319 = vst.msk [vmem:[#allocation2 + $0x60] sm:$0xff] %vm306, 0.0
          %320 = vst.msk [vmem:[#allocation2 + $0x68] sm:$0xff] %vm306, 0.0
          %321 = vst.msk [vmem:[#allocation2 + $0x70] sm:$0xff] %vm306, 0.0
          %322 = vst.msk [vmem:[#allocation2 + $0x78] sm:$0xff] %vm306, 0.0
          %323 = vst.msk [vmem:[#allocation2 + $0x80] sm:$0xff] %vm306, 0.0
          %324 = vst.msk [vmem:[#allocation2 + $0x88] sm:$0xff] %vm306, 0.0
          %325 = vst.msk [vmem:[#allocation2 + $0x90] sm:$0xff] %vm306, 0.0
          %326 = vst.msk [vmem:[#allocation2 + $0x98] sm:$0xff] %vm306, 0.0
          %327 = vst.msk [vmem:[#allocation2 + $0xa0] sm:$0xff] %vm306, 0.0
          %328 = vst.msk [vmem:[#allocation2 + $0xa8] sm:$0xff] %vm306, 0.0
          %329 = vst.msk [vmem:[#allocation2 + $0xb0] sm:$0xff] %vm306, 0.0
          %330 = vst.msk [vmem:[#allocation2 + $0xb8] sm:$0xff] %vm306, 0.0
          %331 = vst.msk [vmem:[#allocation2 + $0xc0] sm:$0xff] %vm306, 0.0
          %332 = vst.msk [vmem:[#allocation2 + $0xc8] sm:$0xff] %vm306, 0.0
          %333 = vst.msk [vmem:[#allocation2 + $0xd0] sm:$0xff] %vm306, 0.0
          %334 = vst.msk [vmem:[#allocation2 + $0xd8] sm:$0xff] %vm306, 0.0
          %335 = vst.msk [vmem:[#allocation2 + $0xe0] sm:$0xff] %vm306, 0.0
          %336 = vst.msk [vmem:[#allocation2 + $0xe8] sm:$0xff] %vm306, 0.0
          %337 = vst.msk [vmem:[#allocation2 + $0xf0] sm:$0xff] %vm306, 0.0
          %338 = vst.msk [vmem:[#allocation2 + $0xf8] sm:$0xff] %vm306, 0.0
        $region44: #{tpu_custom_call.1} parent=39 // pred_fallthru
          _
        %v339 = vld [vmem:[#allocation2] sm:$0xff]
        %v340 = vld [vmem:[#allocation2 + $0x8] sm:$0xff]
        %v341 = vld [vmem:[#allocation2 + $0x10] sm:$0xff]
        %v342 = vld [vmem:[#allocation2 + $0x18] sm:$0xff]
        %v343 = vld [vmem:[#allocation2 + $0x20] sm:$0xff]
        %v344 = vld [vmem:[#allocation2 + $0x28] sm:$0xff]
        %v345 = vld [vmem:[#allocation2 + $0x30] sm:$0xff]
        %v346 = vld [vmem:[#allocation2 + $0x38] sm:$0xff]
        %v347 = vld [vmem:[#allocation2 + $0x40] sm:$0xff]
        %v348 = vld [vmem:[#allocation2 + $0x48] sm:$0xff]
        %v349 = vld [vmem:[#allocation2 + $0x50] sm:$0xff]
        %v350 = vld [vmem:[#allocation2 + $0x58] sm:$0xff]
        %v351 = vld [vmem:[#allocation2 + $0x60] sm:$0xff]
        %v352 = vld [vmem:[#allocation2 + $0x68] sm:$0xff]
        %v353 = vld [vmem:[#allocation2 + $0x70] sm:$0xff]
        %v354 = vld [vmem:[#allocation2 + $0x78] sm:$0xff]
        %v355 = vld [vmem:[#allocation2 + $0x80] sm:$0xff]
        %v356 = vld [vmem:[#allocation2 + $0x88] sm:$0xff]
        %v357 = vld [vmem:[#allocation2 + $0x90] sm:$0xff]
        %v358 = vld [vmem:[#allocation2 + $0x98] sm:$0xff]
        %v359 = vld [vmem:[#allocation2 + $0xa0] sm:$0xff]
        %v360 = vld [vmem:[#allocation2 + $0xa8] sm:$0xff]
        %v361 = vld [vmem:[#allocation2 + $0xb0] sm:$0xff]
        %v362 = vld [vmem:[#allocation2 + $0xb8] sm:$0xff]
        %v363 = vld [vmem:[#allocation2 + $0xc0] sm:$0xff]
        %v364 = vld [vmem:[#allocation2 + $0xc8] sm:$0xff]
        %v365 = vld [vmem:[#allocation2 + $0xd0] sm:$0xff]
        %v366 = vld [vmem:[#allocation2 + $0xd8] sm:$0xff]
        %v367 = vld [vmem:[#allocation2 + $0xe0] sm:$0xff]
        %v368 = vld [vmem:[#allocation2 + $0xe8] sm:$0xff]
        %v369 = vld [vmem:[#allocation2 + $0xf0] sm:$0xff]
        %v370 = vld [vmem:[#allocation2 + $0xf8] sm:$0xff]
        %v371 = vld [vmem:[%s285] sm:$0xff]
        %v372 = vld [vmem:[%s285 + $0x8] sm:$0xff]
        %v373 = vld [vmem:[%s285 + $0x10] sm:$0xff]
        %v374 = vld [vmem:[%s285 + $0x18] sm:$0xff]
        %v375 = vld [vmem:[%s285 + $0x20] sm:$0xff]
        %v376 = vld [vmem:[%s285 + $0x28] sm:$0xff]
        %v377 = vld [vmem:[%s285 + $0x30] sm:$0xff]
        %v378 = vld [vmem:[%s285 + $0x38] sm:$0xff]
        %v379 = vld [vmem:[%s285 + $0x40] sm:$0xff]
        %v380 = vld [vmem:[%s285 + $0x48] sm:$0xff]
        %v381 = vld [vmem:[%s285 + $0x50] sm:$0xff]
        %v382 = vld [vmem:[%s285 + $0x58] sm:$0xff]
        %v383 = vld [vmem:[%s285 + $0x60] sm:$0xff]
        %v384 = vld [vmem:[%s285 + $0x68] sm:$0xff]
        %v385 = vld [vmem:[%s285 + $0x70] sm:$0xff]
        %v386 = vld [vmem:[%s285 + $0x78] sm:$0xff]
        %v387 = vld [vmem:[%s285 + $0x80] sm:$0xff]
        %v388 = vld [vmem:[%s285 + $0x88] sm:$0xff]
        %v389 = vld [vmem:[%s285 + $0x90] sm:$0xff]
        %v390 = vld [vmem:[%s285 + $0x98] sm:$0xff]
        %v391 = vld [vmem:[%s285 + $0xa0] sm:$0xff]
        %v392 = vld [vmem:[%s285 + $0xa8] sm:$0xff]
        %v393 = vld [vmem:[%s285 + $0xb0] sm:$0xff]
        %v394 = vld [vmem:[%s285 + $0xb8] sm:$0xff]
        %v395 = vld [vmem:[%s285 + $0xc0] sm:$0xff]
        %v396 = vld [vmem:[%s285 + $0xc8] sm:$0xff]
        %v397 = vld [vmem:[%s285 + $0xd0] sm:$0xff]
        %v398 = vld [vmem:[%s285 + $0xd8] sm:$0xff]
        %v399 = vld [vmem:[%s285 + $0xe0] sm:$0xff]
        %v400 = vld [vmem:[%s285 + $0xe8] sm:$0xff]
        %v401 = vld [vmem:[%s285 + $0xf0] sm:$0xff]
        %v402 = vld [vmem:[%s285 + $0xf8] sm:$0xff]
        %v403 = vld [vmem:[%s285 + $0x100] sm:$0xff]
        %v404 = vld [vmem:[%s285 + $0x108] sm:$0xff]
        %v405 = vld [vmem:[%s285 + $0x110] sm:$0xff]
        %v406 = vld [vmem:[%s285 + $0x118] sm:$0xff]
        %v407 = vld [vmem:[%s285 + $0x120] sm:$0xff]
        %v408 = vld [vmem:[%s285 + $0x128] sm:$0xff]
        %v409 = vld [vmem:[%s285 + $0x130] sm:$0xff]
        %v410 = vld [vmem:[%s285 + $0x138] sm:$0xff]
        %v411 = vld [vmem:[%s285 + $0x140] sm:$0xff]
        %v412 = vld [vmem:[%s285 + $0x148] sm:$0xff]
        %v413 = vld [vmem:[%s285 + $0x150] sm:$0xff]
        %v414 = vld [vmem:[%s285 + $0x158] sm:$0xff]
        %v415 = vld [vmem:[%s285 + $0x160] sm:$0xff]
        %v416 = vld [vmem:[%s285 + $0x168] sm:$0xff]
        %v417 = vld [vmem:[%s285 + $0x170] sm:$0xff]
        %v418 = vld [vmem:[%s285 + $0x178] sm:$0xff]
        %v419 = vld [vmem:[%s285 + $0x180] sm:$0xff]
        %v420 = vld [vmem:[%s285 + $0x188] sm:$0xff]
        %v421 = vld [vmem:[%s285 + $0x190] sm:$0xff]
        %v422 = vld [vmem:[%s285 + $0x198] sm:$0xff]
        %v423 = vld [vmem:[%s285 + $0x1a0] sm:$0xff]
        %v424 = vld [vmem:[%s285 + $0x1a8] sm:$0xff]
        %v425 = vld [vmem:[%s285 + $0x1b0] sm:$0xff]
        %v426 = vld [vmem:[%s285 + $0x1b8] sm:$0xff]
        %v427 = vld [vmem:[%s285 + $0x1c0] sm:$0xff]
        %v428 = vld [vmem:[%s285 + $0x1c8] sm:$0xff]
        %v429 = vld [vmem:[%s285 + $0x1d0] sm:$0xff]
        %v430 = vld [vmem:[%s285 + $0x1d8] sm:$0xff]
        %v431 = vld [vmem:[%s285 + $0x1e0] sm:$0xff]
        %v432 = vld [vmem:[%s285 + $0x1e8] sm:$0xff]
        %v433 = vld [vmem:[%s285 + $0x1f0] sm:$0xff]
        %v434 = vld [vmem:[%s285 + $0x1f8] sm:$0xff]
        %v435 = vld [vmem:[%s292] sm:$0xf]
        %v436 = vld [vmem:[%s292 + $0x4] sm:$0xf]
        %v437 = vld [vmem:[%s292 + $0x8] sm:$0xf]
        %v438 = vld [vmem:[%s292 + $0xc] sm:$0xf]
        %v439 = vld [vmem:[%s292 + $0x10] sm:$0xf]
        %v440 = vld [vmem:[%s292 + $0x14] sm:$0xf]
        %v441 = vld [vmem:[%s292 + $0x18] sm:$0xf]
        %v442 = vld [vmem:[%s292 + $0x1c] sm:$0xf]
        %v443 = vld [vmem:[%s292 + $0x20] sm:$0xf]
        %v444 = vld [vmem:[%s292 + $0x24] sm:$0xf]
        %v445 = vld [vmem:[%s292 + $0x28] sm:$0xf]
        %v446 = vld [vmem:[%s292 + $0x2c] sm:$0xf]
        %v447 = vld [vmem:[%s292 + $0x30] sm:$0xf]
        %v448 = vld [vmem:[%s292 + $0x34] sm:$0xf]
        %v449 = vld [vmem:[%s292 + $0x38] sm:$0xf]
        %v450 = vld [vmem:[%s292 + $0x3c] sm:$0xf]
        %v451 = vld [vmem:[%s292 + $0x40] sm:$0xf]
        %v452 = vld [vmem:[%s292 + $0x44] sm:$0xf]
        %v453 = vld [vmem:[%s292 + $0x48] sm:$0xf]
        %v454 = vld [vmem:[%s292 + $0x4c] sm:$0xf]
        %v455 = vld [vmem:[%s292 + $0x50] sm:$0xf]
        %v456 = vld [vmem:[%s292 + $0x54] sm:$0xf]
        %v457 = vld [vmem:[%s292 + $0x58] sm:$0xf]
        %v458 = vld [vmem:[%s292 + $0x5c] sm:$0xf]
        %v459 = vld [vmem:[%s292 + $0x60] sm:$0xf]
        %v460 = vld [vmem:[%s292 + $0x64] sm:$0xf]
        %v461 = vld [vmem:[%s292 + $0x68] sm:$0xf]
        %v462 = vld [vmem:[%s292 + $0x6c] sm:$0xf]
        %v463 = vld [vmem:[%s292 + $0x70] sm:$0xf]
        %v464 = vld [vmem:[%s292 + $0x74] sm:$0xf]
        %v465 = vld [vmem:[%s292 + $0x78] sm:$0xf]
        %v466 = vld [vmem:[%s292 + $0x7c] sm:$0xf]
        %v467 = vld [vmem:[%s292 + $0x80] sm:$0xf]
        %v468 = vld [vmem:[%s292 + $0x84] sm:$0xf]
        %v469 = vld [vmem:[%s292 + $0x88] sm:$0xf]
        %v470 = vld [vmem:[%s292 + $0x8c] sm:$0xf]
        %v471 = vld [vmem:[%s292 + $0x90] sm:$0xf]
        %v472 = vld [vmem:[%s292 + $0x94] sm:$0xf]
        %v473 = vld [vmem:[%s292 + $0x98] sm:$0xf]
        %v474 = vld [vmem:[%s292 + $0x9c] sm:$0xf]
        %v475 = vld [vmem:[%s292 + $0xa0] sm:$0xf]
        %v476 = vld [vmem:[%s292 + $0xa4] sm:$0xf]
        %v477 = vld [vmem:[%s292 + $0xa8] sm:$0xf]
        %v478 = vld [vmem:[%s292 + $0xac] sm:$0xf]
        %v479 = vld [vmem:[%s292 + $0xb0] sm:$0xf]
        %v480 = vld [vmem:[%s292 + $0xb4] sm:$0xf]
        %v481 = vld [vmem:[%s292 + $0xb8] sm:$0xf]
        %v482 = vld [vmem:[%s292 + $0xbc] sm:$0xf]
        %v483 = vld [vmem:[%s292 + $0xc0] sm:$0xf]
        %v484 = vld [vmem:[%s292 + $0xc4] sm:$0xf]
        %v485 = vld [vmem:[%s292 + $0xc8] sm:$0xf]
        %v486 = vld [vmem:[%s292 + $0xcc] sm:$0xf]
        %v487 = vld [vmem:[%s292 + $0xd0] sm:$0xf]
        %v488 = vld [vmem:[%s292 + $0xd4] sm:$0xf]
        %v489 = vld [vmem:[%s292 + $0xd8] sm:$0xf]
        %v490 = vld [vmem:[%s292 + $0xdc] sm:$0xf]
        %v491 = vld [vmem:[%s292 + $0xe0] sm:$0xf]
        %v492 = vld [vmem:[%s292 + $0xe4] sm:$0xf]
        %v493 = vld [vmem:[%s292 + $0xe8] sm:$0xf]
        %v494 = vld [vmem:[%s292 + $0xec] sm:$0xf]
        %v495 = vld [vmem:[%s292 + $0xf0] sm:$0xf]
        %v496 = vld [vmem:[%s292 + $0xf4] sm:$0xf]
        %v497 = vld [vmem:[%s292 + $0xf8] sm:$0xf]
        %v498 = vld [vmem:[%s292 + $0xfc] sm:$0xf]
        %v563 = vunpack.c.l.b16 %v371
        %v564 = vunpack.c.h.b16 %v371
        %v565 = vunpack.c.l.b16 %v372
        %v566 = vunpack.c.h.b16 %v372
        %v567 = vunpack.c.l.b16 %v373
        %v568 = vunpack.c.h.b16 %v373
        %v569 = vunpack.c.l.b16 %v374
        %v570 = vunpack.c.h.b16 %v374
        %v571 = vunpack.c.l.b16 %v375
        %v572 = vunpack.c.h.b16 %v375
        %v573 = vunpack.c.l.b16 %v376
        %v574 = vunpack.c.h.b16 %v376
        %v575 = vunpack.c.l.b16 %v377
        %v576 = vunpack.c.h.b16 %v377
        %v577 = vunpack.c.l.b16 %v378
        %v578 = vunpack.c.h.b16 %v378
        %v579 = vunpack.c.l.b16 %v379
        %v580 = vunpack.c.h.b16 %v379
        %v581 = vunpack.c.l.b16 %v380
        %v582 = vunpack.c.h.b16 %v380
        %v583 = vunpack.c.l.b16 %v381
        %v584 = vunpack.c.h.b16 %v381
        %v585 = vunpack.c.l.b16 %v382
        %v586 = vunpack.c.h.b16 %v382
        %v587 = vunpack.c.l.b16 %v383
        %v588 = vunpack.c.h.b16 %v383
        %v589 = vunpack.c.l.b16 %v384
        %v590 = vunpack.c.h.b16 %v384
        %v591 = vunpack.c.l.b16 %v385
        %v592 = vunpack.c.h.b16 %v385
        %v593 = vunpack.c.l.b16 %v386
        %v594 = vunpack.c.h.b16 %v386
        %v595 = vunpack.c.l.b16 %v387
        %v596 = vunpack.c.h.b16 %v387
        %v597 = vunpack.c.l.b16 %v388
        %v598 = vunpack.c.h.b16 %v388
        %v599 = vunpack.c.l.b16 %v389
        %v600 = vunpack.c.h.b16 %v389
        %v601 = vunpack.c.l.b16 %v390
        %v602 = vunpack.c.h.b16 %v390
        %v603 = vunpack.c.l.b16 %v391
        %v604 = vunpack.c.h.b16 %v391
        %v605 = vunpack.c.l.b16 %v392
        %v606 = vunpack.c.h.b16 %v392
        %v607 = vunpack.c.l.b16 %v393
        %v608 = vunpack.c.h.b16 %v393
        %v609 = vunpack.c.l.b16 %v394
        %v610 = vunpack.c.h.b16 %v394
        %v611 = vunpack.c.l.b16 %v395
        %v612 = vunpack.c.h.b16 %v395
        %v613 = vunpack.c.l.b16 %v396
        %v614 = vunpack.c.h.b16 %v396
        %v615 = vunpack.c.l.b16 %v397
        %v616 = vunpack.c.h.b16 %v397
        %v617 = vunpack.c.l.b16 %v398
        %v618 = vunpack.c.h.b16 %v398
        %v619 = vunpack.c.l.b16 %v399
        %v620 = vunpack.c.h.b16 %v399
        %v621 = vunpack.c.l.b16 %v400
        %v622 = vunpack.c.h.b16 %v400
        %v623 = vunpack.c.l.b16 %v401
        %v624 = vunpack.c.h.b16 %v401
        %v625 = vunpack.c.l.b16 %v402
        %v626 = vunpack.c.h.b16 %v402
        %v627 = vunpack.c.l.b16 %v403
        %v628 = vunpack.c.h.b16 %v403
        %v629 = vunpack.c.l.b16 %v404
        %v630 = vunpack.c.h.b16 %v404
        %v631 = vunpack.c.l.b16 %v405
        %v632 = vunpack.c.h.b16 %v405
        %v633 = vunpack.c.l.b16 %v406
        %v634 = vunpack.c.h.b16 %v406
        %v635 = vunpack.c.l.b16 %v407
        %v636 = vunpack.c.h.b16 %v407
        %v637 = vunpack.c.l.b16 %v408
        %v638 = vunpack.c.h.b16 %v408
        %v639 = vunpack.c.l.b16 %v409
        %v640 = vunpack.c.h.b16 %v409
        %v641 = vunpack.c.l.b16 %v410
        %v642 = vunpack.c.h.b16 %v410
        %v643 = vunpack.c.l.b16 %v411
        %v644 = vunpack.c.h.b16 %v411
        %v645 = vunpack.c.l.b16 %v412
        %v646 = vunpack.c.h.b16 %v412
        %v647 = vunpack.c.l.b16 %v413
        %v648 = vunpack.c.h.b16 %v413
        %v649 = vunpack.c.l.b16 %v414
        %v650 = vunpack.c.h.b16 %v414
        %v651 = vunpack.c.l.b16 %v415
        %v652 = vunpack.c.h.b16 %v415
        %v653 = vunpack.c.l.b16 %v416
        %v654 = vunpack.c.h.b16 %v416
        %v655 = vunpack.c.l.b16 %v417
        %v656 = vunpack.c.h.b16 %v417
        %v657 = vunpack.c.l.b16 %v418
        %v658 = vunpack.c.h.b16 %v418
        %v659 = vunpack.c.l.b16 %v419
        %v660 = vunpack.c.h.b16 %v419
        %v661 = vunpack.c.l.b16 %v420
        %v662 = vunpack.c.h.b16 %v420
        %v663 = vunpack.c.l.b16 %v421
        %v664 = vunpack.c.h.b16 %v421
        %v665 = vunpack.c.l.b16 %v422
        %v666 = vunpack.c.h.b16 %v422
        %v667 = vunpack.c.l.b16 %v423
        %v668 = vunpack.c.h.b16 %v423
        %v669 = vunpack.c.l.b16 %v424
        %v670 = vunpack.c.h.b16 %v424
        %v671 = vunpack.c.l.b16 %v425
        %v672 = vunpack.c.h.b16 %v425
        %v673 = vunpack.c.l.b16 %v426
        %v674 = vunpack.c.h.b16 %v426
        %v675 = vunpack.c.l.b16 %v427
        %v676 = vunpack.c.h.b16 %v427
        %v677 = vunpack.c.l.b16 %v428
        %v678 = vunpack.c.h.b16 %v428
        %v679 = vunpack.c.l.b16 %v429
        %v680 = vunpack.c.h.b16 %v429
        %v681 = vunpack.c.l.b16 %v430
        %v682 = vunpack.c.h.b16 %v430
        %v683 = vunpack.c.l.b16 %v431
        %v684 = vunpack.c.h.b16 %v431
        %v685 = vunpack.c.l.b16 %v432
        %v686 = vunpack.c.h.b16 %v432
        %v687 = vunpack.c.l.b16 %v433
        %v688 = vunpack.c.h.b16 %v433
        %v689 = vunpack.c.l.b16 %v434
        %v690 = vunpack.c.h.b16 %v434
        %v691 = vpack.c.b16 %v567, %v563
        %v692 = vpack.c.b16 %v568, %v564
        %v693 = vpack.c.b16 %v569, %v565
        %v694 = vpack.c.b16 %v570, %v566
        %v695 = vpack.c.b16 %v575, %v571
        %v696 = vpack.c.b16 %v576, %v572
        %v697 = vpack.c.b16 %v577, %v573
        %v698 = vpack.c.b16 %v578, %v574
        %v699 = vpack.c.b16 %v583, %v579
        %v700 = vpack.c.b16 %v584, %v580
        %v701 = vpack.c.b16 %v585, %v581
        %v702 = vpack.c.b16 %v586, %v582
        %v703 = vpack.c.b16 %v591, %v587
        %v704 = vpack.c.b16 %v592, %v588
        %v705 = vpack.c.b16 %v593, %v589
        %v706 = vpack.c.b16 %v594, %v590
        %v707 = vpack.c.b16 %v599, %v595
        %v708 = vpack.c.b16 %v600, %v596
        %v709 = vpack.c.b16 %v601, %v597
        %v710 = vpack.c.b16 %v602, %v598
        %v711 = vpack.c.b16 %v607, %v603
        %v712 = vpack.c.b16 %v608, %v604
        %v713 = vpack.c.b16 %v609, %v605
        %v714 = vpack.c.b16 %v610, %v606
        %v715 = vpack.c.b16 %v615, %v611
        %v716 = vpack.c.b16 %v616, %v612
        %v717 = vpack.c.b16 %v617, %v613
        %v718 = vpack.c.b16 %v618, %v614
        %v719 = vpack.c.b16 %v623, %v619
        %v720 = vpack.c.b16 %v624, %v620
        %v721 = vpack.c.b16 %v625, %v621
        %v722 = vpack.c.b16 %v626, %v622
        %v723 = vpack.c.b16 %v631, %v627
        %v724 = vpack.c.b16 %v632, %v628
        %v725 = vpack.c.b16 %v633, %v629
        %v726 = vpack.c.b16 %v634, %v630
        %v727 = vpack.c.b16 %v639, %v635
        %v728 = vpack.c.b16 %v640, %v636
        %v729 = vpack.c.b16 %v641, %v637
        %v730 = vpack.c.b16 %v642, %v638
        %v731 = vpack.c.b16 %v647, %v643
        %v732 = vpack.c.b16 %v648, %v644
        %v733 = vpack.c.b16 %v649, %v645
        %v734 = vpack.c.b16 %v650, %v646
        %v735 = vpack.c.b16 %v655, %v651
        %v736 = vpack.c.b16 %v656, %v652
        %v737 = vpack.c.b16 %v657, %v653
        %v738 = vpack.c.b16 %v658, %v654
        %v739 = vpack.c.b16 %v663, %v659
        %v740 = vpack.c.b16 %v664, %v660
        %v741 = vpack.c.b16 %v665, %v661
        %v742 = vpack.c.b16 %v666, %v662
        %v743 = vpack.c.b16 %v671, %v667
        %v744 = vpack.c.b16 %v672, %v668
        %v745 = vpack.c.b16 %v673, %v669
        %v746 = vpack.c.b16 %v674, %v670
        %v747 = vpack.c.b16 %v679, %v675
        %v748 = vpack.c.b16 %v680, %v676
        %v749 = vpack.c.b16 %v681, %v677
        %v750 = vpack.c.b16 %v682, %v678
        %v751 = vpack.c.b16 %v687, %v683
        %v752 = vpack.c.b16 %v688, %v684
        %v753 = vpack.c.b16 %v689, %v685
        %v754 = vpack.c.b16 %v690, %v686
        %v883 = vunpack.c.l.b16 %v435
        %v884 = vunpack.c.l.b16 %v436
        %v885 = vunpack.c.l.b16 %v437
        %v886 = vunpack.c.l.b16 %v438
        %v887 = vunpack.c.l.b16 %v439
        %v888 = vunpack.c.l.b16 %v440
        %v889 = vunpack.c.l.b16 %v441
        %v890 = vunpack.c.l.b16 %v442
        %v891 = vunpack.c.l.b16 %v443
        %v892 = vunpack.c.l.b16 %v444
        %v893 = vunpack.c.l.b16 %v445
        %v894 = vunpack.c.l.b16 %v446
        %v895 = vunpack.c.l.b16 %v447
        %v896 = vunpack.c.l.b16 %v448
        %v897 = vunpack.c.l.b16 %v449
        %v898 = vunpack.c.l.b16 %v450
        %v899 = vunpack.c.l.b16 %v451
        %v900 = vunpack.c.l.b16 %v452
        %v901 = vunpack.c.l.b16 %v453
        %v902 = vunpack.c.l.b16 %v454
        %v903 = vunpack.c.l.b16 %v455
        %v904 = vunpack.c.l.b16 %v456
        %v905 = vunpack.c.l.b16 %v457
        %v906 = vunpack.c.l.b16 %v458
        %v907 = vunpack.c.l.b16 %v459
        %v908 = vunpack.c.l.b16 %v460
        %v909 = vunpack.c.l.b16 %v461
        %v910 = vunpack.c.l.b16 %v462
        %v911 = vunpack.c.l.b16 %v463
        %v912 = vunpack.c.l.b16 %v464
        %v913 = vunpack.c.l.b16 %v465
        %v914 = vunpack.c.l.b16 %v466
        %v915 = vunpack.c.l.b16 %v467
        %v916 = vunpack.c.l.b16 %v468
        %v917 = vunpack.c.l.b16 %v469
        %v918 = vunpack.c.l.b16 %v470
        %v919 = vunpack.c.l.b16 %v471
        %v920 = vunpack.c.l.b16 %v472
        %v921 = vunpack.c.l.b16 %v473
        %v922 = vunpack.c.l.b16 %v474
        %v923 = vunpack.c.l.b16 %v475
        %v924 = vunpack.c.l.b16 %v476
        %v925 = vunpack.c.l.b16 %v477
        %v926 = vunpack.c.l.b16 %v478
        %v927 = vunpack.c.l.b16 %v479
        %v928 = vunpack.c.l.b16 %v480
        %v929 = vunpack.c.l.b16 %v481
        %v930 = vunpack.c.l.b16 %v482
        %v931 = vunpack.c.l.b16 %v483
        %v932 = vunpack.c.l.b16 %v484
        %v933 = vunpack.c.l.b16 %v485
        %v934 = vunpack.c.l.b16 %v486
        %v935 = vunpack.c.l.b16 %v487
        %v936 = vunpack.c.l.b16 %v488
        %v937 = vunpack.c.l.b16 %v489
        %v938 = vunpack.c.l.b16 %v490
        %v939 = vunpack.c.l.b16 %v491
        %v940 = vunpack.c.l.b16 %v492
        %v941 = vunpack.c.l.b16 %v493
        %v942 = vunpack.c.l.b16 %v494
        %v943 = vunpack.c.l.b16 %v495
        %v944 = vunpack.c.l.b16 %v496
        %v945 = vunpack.c.l.b16 %v497
        %v946 = vunpack.c.l.b16 %v498
        %v947 = vpack.c.b16 %v884, %v883
        %v948 = vpack.c.b16 %v886, %v885
        %v949 = vpack.c.b16 %v888, %v887
        %v950 = vpack.c.b16 %v890, %v889
        %v951 = vpack.c.b16 %v892, %v891
        %v952 = vpack.c.b16 %v894, %v893
        %v953 = vpack.c.b16 %v896, %v895
        %v954 = vpack.c.b16 %v898, %v897
        %v955 = vpack.c.b16 %v900, %v899
        %v956 = vpack.c.b16 %v902, %v901
        %v957 = vpack.c.b16 %v904, %v903
        %v958 = vpack.c.b16 %v906, %v905
        %v959 = vpack.c.b16 %v908, %v907
        %v960 = vpack.c.b16 %v910, %v909
        %v961 = vpack.c.b16 %v912, %v911
        %v962 = vpack.c.b16 %v914, %v913
        %v963 = vpack.c.b16 %v916, %v915
        %v964 = vpack.c.b16 %v918, %v917
        %v965 = vpack.c.b16 %v920, %v919
        %v966 = vpack.c.b16 %v922, %v921
        %v967 = vpack.c.b16 %v924, %v923
        %v968 = vpack.c.b16 %v926, %v925
        %v969 = vpack.c.b16 %v928, %v927
        %v970 = vpack.c.b16 %v930, %v929
        %v971 = vpack.c.b16 %v932, %v931
        %v972 = vpack.c.b16 %v934, %v933
        %v973 = vpack.c.b16 %v936, %v935
        %v974 = vpack.c.b16 %v938, %v937
        %v975 = vpack.c.b16 %v940, %v939
        %v976 = vpack.c.b16 %v942, %v941
        %v977 = vpack.c.b16 %v944, %v943
        %v978 = vpack.c.b16 %v946, %v945
        %1011 = vmatprep.subr.bf16.mxu0 0
        %1012 = vmatpush1.bf16.msra.mxu0 %v954
        %1013 = vmatprep.subr.bf16.mxu0 0
        %1014 = vmatpush1.bf16.msra.mxu0 %v953
        %1015 = vmatprep.subr.bf16.mxu0 0
        %1016 = vmatpush1.bf16.msra.mxu0 %v952
        %1017 = vmatprep.subr.bf16.mxu0 0
        %1018 = vmatpush1.bf16.msra.mxu0 %v951
        %1019 = vmatprep.subr.bf16.mxu0 0
        %1020 = vmatpush1.bf16.msra.mxu0 %v950
        %1021 = vmatprep.subr.bf16.mxu0 0
        %1022 = vmatpush1.bf16.msra.mxu0 %v949
        %1023 = vmatprep.subr.bf16.mxu0 0
        %1024 = vmatpush1.bf16.msra.mxu0 %v948
        %1025 = vmatprep.subr.bf16.mxu0 0
        %1026 = vmatpush1.bf16.msra.mxu0 %v947
        %1027 = vmatprep.subr.bf16.mxu0 0
        %1028 = vmatpush2.bf16.msra.mxu0 %v962
        %1029 = vmatprep.subr.bf16.mxu0 0
        %1030 = vmatpush2.bf16.msra.mxu0 %v961
        %1031 = vmatprep.subr.bf16.mxu0 0
        %1032 = vmatpush2.bf16.msra.mxu0 %v960
        %1033 = vmatprep.subr.bf16.mxu0 0
        %1034 = vmatpush2.bf16.msra.mxu0 %v959
        %1035 = vmatprep.subr.bf16.mxu0 0
        %1036 = vmatpush2.bf16.msra.mxu0 %v958
        %1037 = vmatprep.subr.bf16.mxu0 0
        %1038 = vmatpush2.bf16.msra.mxu0 %v957
        %1039 = vmatprep.subr.bf16.mxu0 0
        %1040 = vmatpush2.bf16.msra.mxu0 %v956
        %1041 = vmatprep.subr.bf16.mxu0 0
        %1042 = vmatpush2.bf16.msra.mxu0 %v955
        %1043 = vmatprep.mubr.bf16.mxu0 %v692
        %1044 = vmatmul.mubr.bf16.gmra.mxu0 %v691
        %v1045 = vpop.f32.mrf.mxu0
        %v1046 = vadd.f32 0.0, %v1045
        %v1047 = vpop.f32.mrf.mxu0
        %v1048 = vpop.f32.mrf.mxu0
        %v1049 = vadd.f32 0.0, %v1048
        %v1050 = vpop.f32.mrf.mxu0
        %1051 = vmatprep.mubr.bf16.mxu0 %v696
        %1052 = vmatmul.mubr.bf16.gmra.mxu0 %v695
        %v1053 = vpop.f32.mrf.mxu0
        %v1054 = vadd.f32 0.0, %v1053
        %v1055 = vpop.f32.mrf.mxu0
        %v1056 = vpop.f32.mrf.mxu0
        %v1057 = vadd.f32 0.0, %v1056
        %v1058 = vpop.f32.mrf.mxu0
        %1059 = vmatprep.mubr.bf16.mxu0 %v700
        %1060 = vmatmul.mubr.bf16.gmra.mxu0 %v699
        %v1061 = vpop.f32.mrf.mxu0
        %v1062 = vadd.f32 0.0, %v1061
        %v1063 = vpop.f32.mrf.mxu0
        %v1064 = vpop.f32.mrf.mxu0
        %v1065 = vadd.f32 0.0, %v1064
        %v1066 = vpop.f32.mrf.mxu0
        %1067 = vmatprep.mubr.bf16.mxu0 %v704
        %1068 = vmatmul.mubr.bf16.gmra.mxu0 %v703
        %v1069 = vpop.f32.mrf.mxu0
        %v1070 = vadd.f32 0.0, %v1069
        %v1071 = vpop.f32.mrf.mxu0
        %v1072 = vpop.f32.mrf.mxu0
        %v1073 = vadd.f32 0.0, %v1072
        %v1074 = vpop.f32.mrf.mxu0
        %1075 = vmatprep.mubr.bf16.mxu0 %v708
        %1076 = vmatmul.mubr.bf16.gmra.mxu0 %v707
        %v1077 = vpop.f32.mrf.mxu0
        %v1078 = vadd.f32 0.0, %v1077
        %v1079 = vpop.f32.mrf.mxu0
        %v1080 = vpop.f32.mrf.mxu0
        %v1081 = vadd.f32 0.0, %v1080
        %v1082 = vpop.f32.mrf.mxu0
        %1083 = vmatprep.mubr.bf16.mxu0 %v712
        %1084 = vmatmul.mubr.bf16.gmra.mxu0 %v711
        %v1085 = vpop.f32.mrf.mxu0
        %v1086 = vadd.f32 0.0, %v1085
        %v1087 = vpop.f32.mrf.mxu0
        %v1088 = vpop.f32.mrf.mxu0
        %v1089 = vadd.f32 0.0, %v1088
        %v1090 = vpop.f32.mrf.mxu0
        %1091 = vmatprep.mubr.bf16.mxu0 %v716
        %1092 = vmatmul.mubr.bf16.gmra.mxu0 %v715
        %v1093 = vpop.f32.mrf.mxu0
        %v1094 = vadd.f32 0.0, %v1093
        %v1095 = vpop.f32.mrf.mxu0
        %v1096 = vpop.f32.mrf.mxu0
        %v1097 = vadd.f32 0.0, %v1096
        %v1098 = vpop.f32.mrf.mxu0
        %1099 = vmatprep.mubr.bf16.mxu0 %v720
        %1100 = vmatmul.mubr.bf16.gmra.mxu0 %v719
        %v1101 = vpop.f32.mrf.mxu0
        %v1102 = vadd.f32 0.0, %v1101
        %v1103 = vpop.f32.mrf.mxu0
        %v1104 = vpop.f32.mrf.mxu0
        %v1105 = vadd.f32 0.0, %v1104
        %v1106 = vpop.f32.mrf.mxu0
        %1107 = vmatprep.mubr.bf16.mxu0 %v724
        %1108 = vmatmul.mubr.bf16.gmra.mxu0 %v723
        %v1109 = vpop.f32.mrf.mxu0
        %v1110 = vadd.f32 0.0, %v1109
        %v1111 = vpop.f32.mrf.mxu0
        %v1112 = vpop.f32.mrf.mxu0
        %v1113 = vadd.f32 0.0, %v1112
        %v1114 = vpop.f32.mrf.mxu0
        %1115 = vmatprep.mubr.bf16.mxu0 %v728
        %1116 = vmatmul.mubr.bf16.gmra.mxu0 %v727
        %v1117 = vpop.f32.mrf.mxu0
        %v1118 = vadd.f32 0.0, %v1117
        %v1119 = vpop.f32.mrf.mxu0
        %v1120 = vpop.f32.mrf.mxu0
        %v1121 = vadd.f32 0.0, %v1120
        %v1122 = vpop.f32.mrf.mxu0
        %1123 = vmatprep.mubr.bf16.mxu0 %v732
        %1124 = vmatmul.mubr.bf16.gmra.mxu0 %v731
        %v1125 = vpop.f32.mrf.mxu0
        %v1126 = vadd.f32 0.0, %v1125
        %v1127 = vpop.f32.mrf.mxu0
        %v1128 = vpop.f32.mrf.mxu0
        %v1129 = vadd.f32 0.0, %v1128
        %v1130 = vpop.f32.mrf.mxu0
        %1131 = vmatprep.mubr.bf16.mxu0 %v736
        %1132 = vmatmul.mubr.bf16.gmra.mxu0 %v735
        %v1133 = vpop.f32.mrf.mxu0
        %v1134 = vadd.f32 0.0, %v1133
        %v1135 = vpop.f32.mrf.mxu0
        %v1136 = vpop.f32.mrf.mxu0
        %v1137 = vadd.f32 0.0, %v1136
        %v1138 = vpop.f32.mrf.mxu0
        %1139 = vmatprep.mubr.bf16.mxu0 %v740
        %1140 = vmatmul.mubr.bf16.gmra.mxu0 %v739
        %v1141 = vpop.f32.mrf.mxu0
        %v1142 = vadd.f32 0.0, %v1141
        %v1143 = vpop.f32.mrf.mxu0
        %v1144 = vpop.f32.mrf.mxu0
        %v1145 = vadd.f32 0.0, %v1144
        %v1146 = vpop.f32.mrf.mxu0
        %1147 = vmatprep.mubr.bf16.mxu0 %v744
        %1148 = vmatmul.mubr.bf16.gmra.mxu0 %v743
        %v1149 = vpop.f32.mrf.mxu0
        %v1150 = vadd.f32 0.0, %v1149
        %v1151 = vpop.f32.mrf.mxu0
        %v1152 = vpop.f32.mrf.mxu0
        %v1153 = vadd.f32 0.0, %v1152
        %v1154 = vpop.f32.mrf.mxu0
        %1155 = vmatprep.mubr.bf16.mxu0 %v748
        %1156 = vmatmul.mubr.bf16.gmra.mxu0 %v747
        %v1157 = vpop.f32.mrf.mxu0
        %v1158 = vadd.f32 0.0, %v1157
        %v1159 = vpop.f32.mrf.mxu0
        %v1160 = vpop.f32.mrf.mxu0
        %v1161 = vadd.f32 0.0, %v1160
        %v1162 = vpop.f32.mrf.mxu0
        %1163 = vmatprep.mubr.bf16.mxu0 %v752
        %1164 = vmatmul.mubr.bf16.gmra.mxu0 %v751
        %v1165 = vpop.f32.mrf.mxu0
        %v1166 = vadd.f32 0.0, %v1165
        %v1167 = vpop.f32.mrf.mxu0
        %v1168 = vpop.f32.mrf.mxu0
        %v1169 = vadd.f32 0.0, %v1168
        %v1170 = vpop.f32.mrf.mxu0
        %1171 = vdwg.mxu0
        %1172 = vmatprep.subr.bf16.mxu0 0
        %1173 = vmatpush1.bf16.msra.mxu0 %v970
        %1174 = vmatprep.subr.bf16.mxu0 0
        %1175 = vmatpush1.bf16.msra.mxu0 %v969
        %1176 = vmatprep.subr.bf16.mxu0 0
        %1177 = vmatpush1.bf16.msra.mxu0 %v968
        %1178 = vmatprep.subr.bf16.mxu0 0
        %1179 = vmatpush1.bf16.msra.mxu0 %v967
        %1180 = vmatprep.subr.bf16.mxu0 0
        %1181 = vmatpush1.bf16.msra.mxu0 %v966
        %1182 = vmatprep.subr.bf16.mxu0 0
        %1183 = vmatpush1.bf16.msra.mxu0 %v965
        %1184 = vmatprep.subr.bf16.mxu0 0
        %1185 = vmatpush1.bf16.msra.mxu0 %v964
        %1186 = vmatprep.subr.bf16.mxu0 0
        %1187 = vmatpush1.bf16.msra.mxu0 %v963
        %1188 = vmatprep.subr.bf16.mxu0 0
        %1189 = vmatpush2.bf16.msra.mxu0 %v978
        %1190 = vmatprep.subr.bf16.mxu0 0
        %1191 = vmatpush2.bf16.msra.mxu0 %v977
        %1192 = vmatprep.subr.bf16.mxu0 0
        %1193 = vmatpush2.bf16.msra.mxu0 %v976
        %1194 = vmatprep.subr.bf16.mxu0 0
        %1195 = vmatpush2.bf16.msra.mxu0 %v975
        %1196 = vmatprep.subr.bf16.mxu0 0
        %1197 = vmatpush2.bf16.msra.mxu0 %v974
        %1198 = vmatprep.subr.bf16.mxu0 0
        %1199 = vmatpush2.bf16.msra.mxu0 %v973
        %1200 = vmatprep.subr.bf16.mxu0 0
        %1201 = vmatpush2.bf16.msra.mxu0 %v972
        %1202 = vmatprep.subr.bf16.mxu0 0
        %1203 = vmatpush2.bf16.msra.mxu0 %v971
        %1204 = vmatprep.mubr.bf16.mxu0 %v694
        %1205 = vmatmul.mubr.bf16.gmra.mxu0 %v693
        %v1206 = vpop.f32.mrf.mxu0
        %v1207 = vadd.f32 %v1046, %v1206
        %v1208 = vpop.f32.mrf.mxu0
        %v1209 = vpop.f32.mrf.mxu0
        %v1210 = vadd.f32 %v1049, %v1209
        %v1211 = vpop.f32.mrf.mxu0
        %1212 = vmatprep.mubr.bf16.mxu0 %v698
        %1213 = vmatmul.mubr.bf16.gmra.mxu0 %v697
        %v1214 = vpop.f32.mrf.mxu0
        %v1215 = vadd.f32 %v1054, %v1214
        %v1216 = vpop.f32.mrf.mxu0
        %v1217 = vpop.f32.mrf.mxu0
        %v1218 = vadd.f32 %v1057, %v1217
        %v1219 = vpop.f32.mrf.mxu0
        %1220 = vmatprep.mubr.bf16.mxu0 %v702
        %1221 = vmatmul.mubr.bf16.gmra.mxu0 %v701
        %v1222 = vpop.f32.mrf.mxu0
        %v1223 = vadd.f32 %v1062, %v1222
        %v1224 = vpop.f32.mrf.mxu0
        %v1225 = vpop.f32.mrf.mxu0
        %v1226 = vadd.f32 %v1065, %v1225
        %v1227 = vpop.f32.mrf.mxu0
        %1228 = vmatprep.mubr.bf16.mxu0 %v706
        %1229 = vmatmul.mubr.bf16.gmra.mxu0 %v705
        %v1230 = vpop.f32.mrf.mxu0
        %v1231 = vadd.f32 %v1070, %v1230
        %v1232 = vpop.f32.mrf.mxu0
        %v1233 = vpop.f32.mrf.mxu0
        %v1234 = vadd.f32 %v1073, %v1233
        %v1235 = vpop.f32.mrf.mxu0
        %1236 = vmatprep.mubr.bf16.mxu0 %v710
        %1237 = vmatmul.mubr.bf16.gmra.mxu0 %v709
        %v1238 = vpop.f32.mrf.mxu0
        %v1239 = vadd.f32 %v1078, %v1238
        %v1240 = vpop.f32.mrf.mxu0
        %v1241 = vpop.f32.mrf.mxu0
        %v1242 = vadd.f32 %v1081, %v1241
        %v1243 = vpop.f32.mrf.mxu0
        %1244 = vmatprep.mubr.bf16.mxu0 %v714
        %1245 = vmatmul.mubr.bf16.gmra.mxu0 %v713
        %v1246 = vpop.f32.mrf.mxu0
        %v1247 = vadd.f32 %v1086, %v1246
        %v1248 = vpop.f32.mrf.mxu0
        %v1249 = vpop.f32.mrf.mxu0
        %v1250 = vadd.f32 %v1089, %v1249
        %v1251 = vpop.f32.mrf.mxu0
        %1252 = vmatprep.mubr.bf16.mxu0 %v718
        %1253 = vmatmul.mubr.bf16.gmra.mxu0 %v717
        %v1254 = vpop.f32.mrf.mxu0
        %v1255 = vadd.f32 %v1094, %v1254
        %v1256 = vpop.f32.mrf.mxu0
        %v1257 = vpop.f32.mrf.mxu0
        %v1258 = vadd.f32 %v1097, %v1257
        %v1259 = vpop.f32.mrf.mxu0
        %1260 = vmatprep.mubr.bf16.mxu0 %v722
        %1261 = vmatmul.mubr.bf16.gmra.mxu0 %v721
        %v1262 = vpop.f32.mrf.mxu0
        %v1263 = vadd.f32 %v1102, %v1262
        %v1264 = vpop.f32.mrf.mxu0
        %v1265 = vpop.f32.mrf.mxu0
        %v1266 = vadd.f32 %v1105, %v1265
        %v1267 = vpop.f32.mrf.mxu0
        %1268 = vmatprep.mubr.bf16.mxu0 %v726
        %1269 = vmatmul.mubr.bf16.gmra.mxu0 %v725
        %v1270 = vpop.f32.mrf.mxu0
        %v1271 = vadd.f32 %v1110, %v1270
        %v1272 = vpop.f32.mrf.mxu0
        %v1273 = vpop.f32.mrf.mxu0
        %v1274 = vadd.f32 %v1113, %v1273
        %v1275 = vpop.f32.mrf.mxu0
        %1276 = vmatprep.mubr.bf16.mxu0 %v730
        %1277 = vmatmul.mubr.bf16.gmra.mxu0 %v729
        %v1278 = vpop.f32.mrf.mxu0
        %v1279 = vadd.f32 %v1118, %v1278
        %v1280 = vpop.f32.mrf.mxu0
        %v1281 = vpop.f32.mrf.mxu0
        %v1282 = vadd.f32 %v1121, %v1281
        %v1283 = vpop.f32.mrf.mxu0
        %1284 = vmatprep.mubr.bf16.mxu0 %v734
        %1285 = vmatmul.mubr.bf16.gmra.mxu0 %v733
        %v1286 = vpop.f32.mrf.mxu0
        %v1287 = vadd.f32 %v1126, %v1286
        %v1288 = vpop.f32.mrf.mxu0
        %v1289 = vpop.f32.mrf.mxu0
        %v1290 = vadd.f32 %v1129, %v1289
        %v1291 = vpop.f32.mrf.mxu0
        %1292 = vmatprep.mubr.bf16.mxu0 %v738
        %1293 = vmatmul.mubr.bf16.gmra.mxu0 %v737
        %v1294 = vpop.f32.mrf.mxu0
        %v1295 = vadd.f32 %v1134, %v1294
        %v1296 = vpop.f32.mrf.mxu0
        %v1297 = vpop.f32.mrf.mxu0
        %v1298 = vadd.f32 %v1137, %v1297
        %v1299 = vpop.f32.mrf.mxu0
        %1300 = vmatprep.mubr.bf16.mxu0 %v742
        %1301 = vmatmul.mubr.bf16.gmra.mxu0 %v741
        %v1302 = vpop.f32.mrf.mxu0
        %v1303 = vadd.f32 %v1142, %v1302
        %v1304 = vpop.f32.mrf.mxu0
        %v1305 = vpop.f32.mrf.mxu0
        %v1306 = vadd.f32 %v1145, %v1305
        %v1307 = vpop.f32.mrf.mxu0
        %1308 = vmatprep.mubr.bf16.mxu0 %v746
        %1309 = vmatmul.mubr.bf16.gmra.mxu0 %v745
        %v1310 = vpop.f32.mrf.mxu0
        %v1311 = vadd.f32 %v1150, %v1310
        %v1312 = vpop.f32.mrf.mxu0
        %v1313 = vpop.f32.mrf.mxu0
        %v1314 = vadd.f32 %v1153, %v1313
        %v1315 = vpop.f32.mrf.mxu0
        %1316 = vmatprep.mubr.bf16.mxu0 %v750
        %1317 = vmatmul.mubr.bf16.gmra.mxu0 %v749
        %v1318 = vpop.f32.mrf.mxu0
        %v1319 = vadd.f32 %v1158, %v1318
        %v1320 = vpop.f32.mrf.mxu0
        %v1321 = vpop.f32.mrf.mxu0
        %v1322 = vadd.f32 %v1161, %v1321
        %v1323 = vpop.f32.mrf.mxu0
        %1324 = vmatprep.mubr.bf16.mxu0 %v754
        %1325 = vmatmul.mubr.bf16.gmra.mxu0 %v753
        %v1326 = vpop.f32.mrf.mxu0
        %v1327 = vadd.f32 %v1166, %v1326
        %v1328 = vpop.f32.mrf.mxu0
        %v1329 = vpop.f32.mrf.mxu0
        %v1330 = vadd.f32 %v1169, %v1329
        %v1331 = vpop.f32.mrf.mxu0
        %1332 = vdwg.mxu0
        %v1333 = vadd.f32 %v339, %v1207
        %v1334 = vadd.f32 %v340, %v1210
        %v1335 = vadd.f32 %v341, %v1215
        %v1336 = vadd.f32 %v342, %v1218
        %v1337 = vadd.f32 %v343, %v1223
        %v1338 = vadd.f32 %v344, %v1226
        %v1339 = vadd.f32 %v345, %v1231
        %v1340 = vadd.f32 %v346, %v1234
        %v1341 = vadd.f32 %v347, %v1239
        %v1342 = vadd.f32 %v348, %v1242
        %v1343 = vadd.f32 %v349, %v1247
        %v1344 = vadd.f32 %v350, %v1250
        %v1345 = vadd.f32 %v351, %v1255
        %v1346 = vadd.f32 %v352, %v1258
        %v1347 = vadd.f32 %v353, %v1263
        %v1348 = vadd.f32 %v354, %v1266
        %v1349 = vadd.f32 %v355, %v1271
        %v1350 = vadd.f32 %v356, %v1274
        %v1351 = vadd.f32 %v357, %v1279
        %v1352 = vadd.f32 %v358, %v1282
        %v1353 = vadd.f32 %v359, %v1287
        %v1354 = vadd.f32 %v360, %v1290
        %v1355 = vadd.f32 %v361, %v1295
        %v1356 = vadd.f32 %v362, %v1298
        %v1357 = vadd.f32 %v363, %v1303
        %v1358 = vadd.f32 %v364, %v1306
        %v1359 = vadd.f32 %v365, %v1311
        %v1360 = vadd.f32 %v366, %v1314
        %v1361 = vadd.f32 %v367, %v1319
        %v1362 = vadd.f32 %v368, %v1322
        %v1363 = vadd.f32 %v369, %v1327
        %v1364 = vadd.f32 %v370, %v1330
        %vm1365 = vcmask 523264
        %1366 = vst.msk [vmem:[#allocation2] sm:$0xff] %vm1365, %v1333
        %1367 = vst.msk [vmem:[#allocation2 + $0x8] sm:$0xff] %vm1365, %v1334
        %1368 = vst.msk [vmem:[#allocation2 + $0x10] sm:$0xff] %vm1365, %v1335
        %1369 = vst.msk [vmem:[#allocation2 + $0x18] sm:$0xff] %vm1365, %v1336
        %1370 = vst.msk [vmem:[#allocation2 + $0x20] sm:$0xff] %vm1365, %v1337
        %1371 = vst.msk [vmem:[#allocation2 + $0x28] sm:$0xff] %vm1365, %v1338
        %1372 = vst.msk [vmem:[#allocation2 + $0x30] sm:$0xff] %vm1365, %v1339
        %1373 = vst.msk [vmem:[#allocation2 + $0x38] sm:$0xff] %vm1365, %v1340
        %1374 = vst.msk [vmem:[#allocation2 + $0x40] sm:$0xff] %vm1365, %v1341
        %1375 = vst.msk [vmem:[#allocation2 + $0x48] sm:$0xff] %vm1365, %v1342
        %1376 = vst.msk [vmem:[#allocation2 + $0x50] sm:$0xff] %vm1365, %v1343
        %1377 = vst.msk [vmem:[#allocation2 + $0x58] sm:$0xff] %vm1365, %v1344
        %1378 = vst.msk [vmem:[#allocation2 + $0x60] sm:$0xff] %vm1365, %v1345
        %1379 = vst.msk [vmem:[#allocation2 + $0x68] sm:$0xff] %vm1365, %v1346
        %1380 = vst.msk [vmem:[#allocation2 + $0x70] sm:$0xff] %vm1365, %v1347
        %1381 = vst.msk [vmem:[#allocation2 + $0x78] sm:$0xff] %vm1365, %v1348
        %1382 = vst.msk [vmem:[#allocation2 + $0x80] sm:$0xff] %vm1365, %v1349
        %1383 = vst.msk [vmem:[#allocation2 + $0x88] sm:$0xff] %vm1365, %v1350
        %1384 = vst.msk [vmem:[#allocation2 + $0x90] sm:$0xff] %vm1365, %v1351
        %1385 = vst.msk [vmem:[#allocation2 + $0x98] sm:$0xff] %vm1365, %v1352
        %1386 = vst.msk [vmem:[#allocation2 + $0xa0] sm:$0xff] %vm1365, %v1353
        %1387 = vst.msk [vmem:[#allocation2 + $0xa8] sm:$0xff] %vm1365, %v1354
        %1388 = vst.msk [vmem:[#allocation2 + $0xb0] sm:$0xff] %vm1365, %v1355
        %1389 = vst.msk [vmem:[#allocation2 + $0xb8] sm:$0xff] %vm1365, %v1356
        %1390 = vst.msk [vmem:[#allocation2 + $0xc0] sm:$0xff] %vm1365, %v1357
        %1391 = vst.msk [vmem:[#allocation2 + $0xc8] sm:$0xff] %vm1365, %v1358
        %1392 = vst.msk [vmem:[#allocation2 + $0xd0] sm:$0xff] %vm1365, %v1359
        %1393 = vst.msk [vmem:[#allocation2 + $0xd8] sm:$0xff] %vm1365, %v1360
        %1394 = vst.msk [vmem:[#allocation2 + $0xe0] sm:$0xff] %vm1365, %v1361
        %1395 = vst.msk [vmem:[#allocation2 + $0xe8] sm:$0xff] %vm1365, %v1362
        %1396 = vst.msk [vmem:[#allocation2 + $0xf0] sm:$0xff] %vm1365, %v1363
        %1397 = vst.msk [vmem:[#allocation2 + $0xf8] sm:$0xff] %vm1365, %v1364
        // Predicated region
        $region45: #{tpu_custom_call.1} parent=39 // pred_check
          %p1398 = pneg %p302
        $region46: #{tpu_custom_call.1} parent=39 // pred_check_branch
          %1400 = sbr.rel (%p1398) target = $region48
        $region47: #{tpu_custom_call.1} parent=39 // pred_region
          %v1401 = vld [vmem:[%s298] sm:$0xff]
          %v1402 = vld [vmem:[%s298 + $0x8] sm:$0xff]
          %v1403 = vld [vmem:[%s298 + $0x10] sm:$0xff]
          %v1404 = vld [vmem:[%s298 + $0x18] sm:$0xff]
          %v1405 = vld [vmem:[%s298 + $0x20] sm:$0xff]
          %v1406 = vld [vmem:[%s298 + $0x28] sm:$0xff]
          %v1407 = vld [vmem:[%s298 + $0x30] sm:$0xff]
          %v1408 = vld [vmem:[%s298 + $0x38] sm:$0xff]
          %v1409 = vld [vmem:[%s298 + $0x40] sm:$0xff]
          %v1410 = vld [vmem:[%s298 + $0x48] sm:$0xff]
          %v1411 = vld [vmem:[%s298 + $0x50] sm:$0xff]
          %v1412 = vld [vmem:[%s298 + $0x58] sm:$0xff]
          %v1413 = vld [vmem:[%s298 + $0x60] sm:$0xff]
          %v1414 = vld [vmem:[%s298 + $0x68] sm:$0xff]
          %v1415 = vld [vmem:[%s298 + $0x70] sm:$0xff]
          %v1416 = vld [vmem:[%s298 + $0x78] sm:$0xff]
          %v1417 = vld [vmem:[%s298 + $0x80] sm:$0xff]
          %v1418 = vld [vmem:[%s298 + $0x88] sm:$0xff]
          %v1419 = vld [vmem:[%s298 + $0x90] sm:$0xff]
          %v1420 = vld [vmem:[%s298 + $0x98] sm:$0xff]
          %v1421 = vld [vmem:[%s298 + $0xa0] sm:$0xff]
          %v1422 = vld [vmem:[%s298 + $0xa8] sm:$0xff]
          %v1423 = vld [vmem:[%s298 + $0xb0] sm:$0xff]
          %v1424 = vld [vmem:[%s298 + $0xb8] sm:$0xff]
          %v1425 = vld [vmem:[%s298 + $0xc0] sm:$0xff]
          %v1426 = vld [vmem:[%s298 + $0xc8] sm:$0xff]
          %v1427 = vld [vmem:[%s298 + $0xd0] sm:$0xff]
          %v1428 = vld [vmem:[%s298 + $0xd8] sm:$0xff]
          %v1429 = vld [vmem:[%s298 + $0xe0] sm:$0xff]
          %v1430 = vld [vmem:[%s298 + $0xe8] sm:$0xff]
          %v1431 = vld [vmem:[%s298 + $0xf0] sm:$0xff]
          %v1432 = vld [vmem:[%s298 + $0xf8] sm:$0xff]
          %v1433 = vld [vmem:[#allocation2] sm:$0xff]
          %v1434 = vld [vmem:[#allocation2 + $0x8] sm:$0xff]
          %v1435 = vld [vmem:[#allocation2 + $0x10] sm:$0xff]
          %v1436 = vld [vmem:[#allocation2 + $0x18] sm:$0xff]
          %v1437 = vld [vmem:[#allocation2 + $0x20] sm:$0xff]
          %v1438 = vld [vmem:[#allocation2 + $0x28] sm:$0xff]
          %v1439 = vld [vmem:[#allocation2 + $0x30] sm:$0xff]
          %v1440 = vld [vmem:[#allocation2 + $0x38] sm:$0xff]
          %v1441 = vld [vmem:[#allocation2 + $0x40] sm:$0xff]
          %v1442 = vld [vmem:[#allocation2 + $0x48] sm:$0xff]
          %v1443 = vld [vmem:[#allocation2 + $0x50] sm:$0xff]
          %v1444 = vld [vmem:[#allocation2 + $0x58] sm:$0xff]
          %v1445 = vld [vmem:[#allocation2 + $0x60] sm:$0xff]
          %v1446 = vld [vmem:[#allocation2 + $0x68] sm:$0xff]
          %v1447 = vld [vmem:[#allocation2 + $0x70] sm:$0xff]
          %v1448 = vld [vmem:[#allocation2 + $0x78] sm:$0xff]
          %v1449 = vld [vmem:[#allocation2 + $0x80] sm:$0xff]
          %v1450 = vld [vmem:[#allocation2 + $0x88] sm:$0xff]
          %v1451 = vld [vmem:[#allocation2 + $0x90] sm:$0xff]
          %v1452 = vld [vmem:[#allocation2 + $0x98] sm:$0xff]
          %v1453 = vld [vmem:[#allocation2 + $0xa0] sm:$0xff]
          %v1454 = vld [vmem:[#allocation2 + $0xa8] sm:$0xff]
          %v1455 = vld [vmem:[#allocation2 + $0xb0] sm:$0xff]
          %v1456 = vld [vmem:[#allocation2 + $0xb8] sm:$0xff]
          %v1457 = vld [vmem:[#allocation2 + $0xc0] sm:$0xff]
          %v1458 = vld [vmem:[#allocation2 + $0xc8] sm:$0xff]
          %v1459 = vld [vmem:[#allocation2 + $0xd0] sm:$0xff]
          %v1460 = vld [vmem:[#allocation2 + $0xd8] sm:$0xff]
          %v1461 = vld [vmem:[#allocation2 + $0xe0] sm:$0xff]
          %v1462 = vld [vmem:[#allocation2 + $0xe8] sm:$0xff]
          %v1463 = vld [vmem:[#allocation2 + $0xf0] sm:$0xff]
          %v1464 = vld [vmem:[#allocation2 + $0xf8] sm:$0xff]
          %v1465 = vadd.f32 %v1433, %v1401
          %v1466 = vadd.f32 %v1434, %v1402
          %v1467 = vadd.f32 %v1435, %v1403
          %v1468 = vadd.f32 %v1436, %v1404
          %v1469 = vadd.f32 %v1437, %v1405
          %v1470 = vadd.f32 %v1438, %v1406
          %v1471 = vadd.f32 %v1439, %v1407
          %v1472 = vadd.f32 %v1440, %v1408
          %v1473 = vadd.f32 %v1441, %v1409
          %v1474 = vadd.f32 %v1442, %v1410
          %v1475 = vadd.f32 %v1443, %v1411
          %v1476 = vadd.f32 %v1444, %v1412
          %v1477 = vadd.f32 %v1445, %v1413
          %v1478 = vadd.f32 %v1446, %v1414
          %v1479 = vadd.f32 %v1447, %v1415
          %v1480 = vadd.f32 %v1448, %v1416
          %v1481 = vadd.f32 %v1449, %v1417
          %v1482 = vadd.f32 %v1450, %v1418
          %v1483 = vadd.f32 %v1451, %v1419
          %v1484 = vadd.f32 %v1452, %v1420
          %v1485 = vadd.f32 %v1453, %v1421
          %v1486 = vadd.f32 %v1454, %v1422
          %v1487 = vadd.f32 %v1455, %v1423
          %v1488 = vadd.f32 %v1456, %v1424
          %v1489 = vadd.f32 %v1457, %v1425
          %v1490 = vadd.f32 %v1458, %v1426
          %v1491 = vadd.f32 %v1459, %v1427
          %v1492 = vadd.f32 %v1460, %v1428
          %v1493 = vadd.f32 %v1461, %v1429
          %v1494 = vadd.f32 %v1462, %v1430
          %v1495 = vadd.f32 %v1463, %v1431
          %v1496 = vadd.f32 %v1464, %v1432
          %v1497 = vmul.f32 %v1433, %v1401
          %v1498 = vmul.f32 %v1434, %v1402
          %v1499 = vmul.f32 %v1435, %v1403
          %v1500 = vmul.f32 %v1436, %v1404
          %v1501 = vmul.f32 %v1437, %v1405
          %v1502 = vmul.f32 %v1438, %v1406
          %v1503 = vmul.f32 %v1439, %v1407
          %v1504 = vmul.f32 %v1440, %v1408
          %v1505 = vmul.f32 %v1441, %v1409
          %v1506 = vmul.f32 %v1442, %v1410
          %v1507 = vmul.f32 %v1443, %v1411
          %v1508 = vmul.f32 %v1444, %v1412
          %v1509 = vmul.f32 %v1445, %v1413
          %v1510 = vmul.f32 %v1446, %v1414
          %v1511 = vmul.f32 %v1447, %v1415
          %v1512 = vmul.f32 %v1448, %v1416
          %v1513 = vmul.f32 %v1449, %v1417
          %v1514 = vmul.f32 %v1450, %v1418
          %v1515 = vmul.f32 %v1451, %v1419
          %v1516 = vmul.f32 %v1452, %v1420
          %v1517 = vmul.f32 %v1453, %v1421
          %v1518 = vmul.f32 %v1454, %v1422
          %v1519 = vmul.f32 %v1455, %v1423
          %v1520 = vmul.f32 %v1456, %v1424
          %v1521 = vmul.f32 %v1457, %v1425
          %v1522 = vmul.f32 %v1458, %v1426
          %v1523 = vmul.f32 %v1459, %v1427
          %v1524 = vmul.f32 %v1460, %v1428
          %v1525 = vmul.f32 %v1461, %v1429
          %v1526 = vmul.f32 %v1462, %v1430
          %v1527 = vmul.f32 %v1463, %v1431
          %v1528 = vmul.f32 %v1464, %v1432
          %1561 = vrot.lane.b32.xlu0 %v1497, 64
          %v1562 = vpop.permute.xlu0 %1561
          %1563 = vrot.lane.b32.xlu0 %v1498, 64
          %v1564 = vpop.permute.xlu0 %1563
          %1565 = vrot.lane.b32.xlu0 %v1499, 64
          %v1566 = vpop.permute.xlu0 %1565
          %1567 = vrot.lane.b32.xlu0 %v1500, 64
          %v1568 = vpop.permute.xlu0 %1567
          %1569 = vrot.lane.b32.xlu0 %v1501, 64
          %v1570 = vpop.permute.xlu0 %1569
          %1571 = vrot.lane.b32.xlu0 %v1502, 64
          %v1572 = vpop.permute.xlu0 %1571
          %1573 = vrot.lane.b32.xlu0 %v1503, 64
          %v1574 = vpop.permute.xlu0 %1573
          %1575 = vrot.lane.b32.xlu0 %v1504, 64
          %v1576 = vpop.permute.xlu0 %1575
          %1577 = vrot.lane.b32.xlu0 %v1505, 64
          %v1578 = vpop.permute.xlu0 %1577
          %1579 = vrot.lane.b32.xlu0 %v1506, 64
          %v1580 = vpop.permute.xlu0 %1579
          %1581 = vrot.lane.b32.xlu0 %v1507, 64
          %v1582 = vpop.permute.xlu0 %1581
          %1583 = vrot.lane.b32.xlu0 %v1508, 64
          %v1584 = vpop.permute.xlu0 %1583
          %1585 = vrot.lane.b32.xlu0 %v1509, 64
          %v1586 = vpop.permute.xlu0 %1585
          %1587 = vrot.lane.b32.xlu0 %v1510, 64
          %v1588 = vpop.permute.xlu0 %1587
          %1589 = vrot.lane.b32.xlu0 %v1511, 64
          %v1590 = vpop.permute.xlu0 %1589
          %1591 = vrot.lane.b32.xlu0 %v1512, 64
          %v1592 = vpop.permute.xlu0 %1591
          %1593 = vrot.lane.b32.xlu0 %v1513, 64
          %v1594 = vpop.permute.xlu0 %1593
          %1595 = vrot.lane.b32.xlu0 %v1514, 64
          %v1596 = vpop.permute.xlu0 %1595
          %1597 = vrot.lane.b32.xlu0 %v1515, 64
          %v1598 = vpop.permute.xlu0 %1597
          %1599 = vrot.lane.b32.xlu0 %v1516, 64
          %v1600 = vpop.permute.xlu0 %1599
          %1601 = vrot.lane.b32.xlu0 %v1517, 64
          %v1602 = vpop.permute.xlu0 %1601
          %1603 = vrot.lane.b32.xlu0 %v1518, 64
          %v1604 = vpop.permute.xlu0 %1603
          %1605 = vrot.lane.b32.xlu0 %v1519, 64
          %v1606 = vpop.permute.xlu0 %1605
          %1607 = vrot.lane.b32.xlu0 %v1520, 64
          %v1608 = vpop.permute.xlu0 %1607
          %1609 = vrot.lane.b32.xlu0 %v1521, 64
          %v1610 = vpop.permute.xlu0 %1609
          %1611 = vrot.lane.b32.xlu0 %v1522, 64
          %v1612 = vpop.permute.xlu0 %1611
          %1613 = vrot.lane.b32.xlu0 %v1523, 64
          %v1614 = vpop.permute.xlu0 %1613
          %1615 = vrot.lane.b32.xlu0 %v1524, 64
          %v1616 = vpop.permute.xlu0 %1615
          %1617 = vrot.lane.b32.xlu0 %v1525, 64
          %v1618 = vpop.permute.xlu0 %1617
          %1619 = vrot.lane.b32.xlu0 %v1526, 64
          %v1620 = vpop.permute.xlu0 %1619
          %1621 = vrot.lane.b32.xlu0 %v1527, 64
          %v1622 = vpop.permute.xlu0 %1621
          %1623 = vrot.lane.b32.xlu0 %v1528, 64
          %v1624 = vpop.permute.xlu0 %1623
          %v1657 = vsel %vm1365, %v1465, %v1562
          %v1658 = vsel %vm1365, %v1466, %v1564
          %v1659 = vsel %vm1365, %v1467, %v1566
          %v1660 = vsel %vm1365, %v1468, %v1568
          %v1661 = vsel %vm1365, %v1469, %v1570
          %v1662 = vsel %vm1365, %v1470, %v1572
          %v1663 = vsel %vm1365, %v1471, %v1574
          %v1664 = vsel %vm1365, %v1472, %v1576
          %v1665 = vsel %vm1365, %v1473, %v1578
          %v1666 = vsel %vm1365, %v1474, %v1580
          %v1667 = vsel %vm1365, %v1475, %v1582
          %v1668 = vsel %vm1365, %v1476, %v1584
          %v1669 = vsel %vm1365, %v1477, %v1586
          %v1670 = vsel %vm1365, %v1478, %v1588
          %v1671 = vsel %vm1365, %v1479, %v1590
          %v1672 = vsel %vm1365, %v1480, %v1592
          %v1673 = vsel %vm1365, %v1481, %v1594
          %v1674 = vsel %vm1365, %v1482, %v1596
          %v1675 = vsel %vm1365, %v1483, %v1598
          %v1676 = vsel %vm1365, %v1484, %v1600
          %v1677 = vsel %vm1365, %v1485, %v1602
          %v1678 = vsel %vm1365, %v1486, %v1604
          %v1679 = vsel %vm1365, %v1487, %v1606
          %v1680 = vsel %vm1365, %v1488, %v1608
          %v1681 = vsel %vm1365, %v1489, %v1610
          %v1682 = vsel %vm1365, %v1490, %v1612
          %v1683 = vsel %vm1365, %v1491, %v1614
          %v1684 = vsel %vm1365, %v1492, %v1616
          %v1685 = vsel %vm1365, %v1493, %v1618
          %v1686 = vsel %vm1365, %v1494, %v1620
          %v1687 = vsel %vm1365, %v1495, %v1622
          %v1688 = vsel %vm1365, %v1496, %v1624
          %v1689 = vld [vmem:[%s3] sm:$0xff]
          %v1690 = vld [vmem:[%s3 + $0x8] sm:$0xff]
          %v1691 = vld [vmem:[%s3 + $0x10] sm:$0xff]
          %v1692 = vld [vmem:[%s3 + $0x18] sm:$0xff]
          %v1693 = vld [vmem:[%s3 + $0x20] sm:$0xff]
          %v1694 = vld [vmem:[%s3 + $0x28] sm:$0xff]
          %v1695 = vld [vmem:[%s3 + $0x30] sm:$0xff]
          %v1696 = vld [vmem:[%s3 + $0x38] sm:$0xff]
          %v1697 = vld [vmem:[%s3 + $0x40] sm:$0xff]
          %v1698 = vld [vmem:[%s3 + $0x48] sm:$0xff]
          %v1699 = vld [vmem:[%s3 + $0x50] sm:$0xff]
          %v1700 = vld [vmem:[%s3 + $0x58] sm:$0xff]
          %v1701 = vld [vmem:[%s3 + $0x60] sm:$0xff]
          %v1702 = vld [vmem:[%s3 + $0x68] sm:$0xff]
          %v1703 = vld [vmem:[%s3 + $0x70] sm:$0xff]
          %v1704 = vld [vmem:[%s3 + $0x78] sm:$0xff]
          %v1705 = vld [vmem:[%s4] sm:$0x1]
          %v1707 = vlaneseq
          %v1708 = vshrl.u32 %v1707, 7
          %v1709 = vsub.s32 0, %v1708
          %v1710 = vrot.slane %v1705, %v1709
          %1712 = vmatprep.subr.mxu0 0.0
          %1713 = vmatpush1.msra.mxu0 %v1704
          %1714 = vmatprep.subr.mxu0 0.0
          %1715 = vmatpush1.msra.mxu0 %v1703
          %1716 = vmatprep.subr.mxu0 0.0
          %1717 = vmatpush1.msra.mxu0 %v1702
          %1718 = vmatprep.subr.mxu0 0.0
          %1719 = vmatpush1.msra.mxu0 %v1701
          %1720 = vmatprep.subr.mxu0 0.0
          %1721 = vmatpush1.msra.mxu0 %v1700
          %1722 = vmatprep.subr.mxu0 0.0
          %1723 = vmatpush1.msra.mxu0 %v1699
          %1724 = vmatprep.subr.mxu0 0.0
          %1725 = vmatpush1.msra.mxu0 %v1698
          %1726 = vmatprep.subr.mxu0 0.0
          %1727 = vmatpush1.msra.mxu0 %v1697
          %1728 = vmatprep.subr.mxu0 0.0
          %1729 = vmatpush1.msra.mxu0 %v1696
          %1730 = vmatprep.subr.mxu0 0.0
          %1731 = vmatpush1.msra.mxu0 %v1695
          %1732 = vmatprep.subr.mxu0 0.0
          %1733 = vmatpush1.msra.mxu0 %v1694
          %1734 = vmatprep.subr.mxu0 0.0
          %1735 = vmatpush1.msra.mxu0 %v1693
          %1736 = vmatprep.subr.mxu0 0.0
          %1737 = vmatpush1.msra.mxu0 %v1692
          %1738 = vmatprep.subr.mxu0 0.0
          %1739 = vmatpush1.msra.mxu0 %v1691
          %1740 = vmatprep.subr.mxu0 0.0
          %1741 = vmatpush1.msra.mxu0 %v1690
          %1742 = vmatprep.subr.mxu0 0.0
          %1743 = vmatpush1.msra.mxu0 %v1689
          %1744 = vmatprep.subr.mxu0 0.0
          %1745 = vmatpush2.msra.mxu0 0.0
          %1746 = vmatprep.subr.mxu0 0.0
          %1747 = vmatpush2.msra.mxu0 0.0
          %1748 = vmatprep.subr.mxu0 0.0
          %1749 = vmatpush2.msra.mxu0 0.0
          %1750 = vmatprep.subr.mxu0 0.0
          %1751 = vmatpush2.msra.mxu0 0.0
          %1752 = vmatprep.subr.mxu0 0.0
          %1753 = vmatpush2.msra.mxu0 0.0
          %1754 = vmatprep.subr.mxu0 0.0
          %1755 = vmatpush2.msra.mxu0 0.0
          %1756 = vmatprep.subr.mxu0 0.0
          %1757 = vmatpush2.msra.mxu0 0.0
          %1758 = vmatprep.subr.mxu0 0.0
          %1759 = vmatpush2.msra.mxu0 0.0
          %1760 = vmatprep.subr.mxu0 0.0
          %1761 = vmatpush2.msra.mxu0 0.0
          %1762 = vmatprep.subr.mxu0 0.0
          %1763 = vmatpush2.msra.mxu0 0.0
          %1764 = vmatprep.subr.mxu0 0.0
          %1765 = vmatpush2.msra.mxu0 0.0
          %1766 = vmatprep.subr.mxu0 0.0
          %1767 = vmatpush2.msra.mxu0 0.0
          %1768 = vmatprep.subr.mxu0 0.0
          %1769 = vmatpush2.msra.mxu0 0.0
          %1770 = vmatprep.subr.mxu0 0.0
          %1771 = vmatpush2.msra.mxu0 0.0
          %1772 = vmatprep.subr.mxu0 0.0
          %1773 = vmatpush2.msra.mxu0 0.0
          %1774 = vmatprep.subr.mxu0 0.0
          %1775 = vmatpush2.msra.mxu0 0.0
          %1776 = vmatprep.mubr.f32.mxu0 0.0
          %1777 = vmatmul.mubr.f32.gmra.mxu0 %v1657
          %v1778 = vpop.f32.mrf.mxu0
          %v1779 = vadd.f32 %v1710, %v1778
          %v1780 = vpop.f32.mrf.mxu0
          %1781 = vmatprep.mubr.f32.mxu0 0.0
          %1782 = vmatmul.mubr.f32.gmra.mxu0 %v1658
          %v1783 = vpop.f32.mrf.mxu0
          %v1784 = vadd.f32 %v1710, %v1783
          %v1785 = vpop.f32.mrf.mxu0
          %1786 = vmatprep.mubr.f32.mxu0 0.0
          %1787 = vmatmul.mubr.f32.gmra.mxu0 %v1659
          %v1788 = vpop.f32.mrf.mxu0
          %v1789 = vadd.f32 %v1710, %v1788
          %v1790 = vpop.f32.mrf.mxu0
          %1791 = vmatprep.mubr.f32.mxu0 0.0
          %1792 = vmatmul.mubr.f32.gmra.mxu0 %v1660
          %v1793 = vpop.f32.mrf.mxu0
          %v1794 = vadd.f32 %v1710, %v1793
          %v1795 = vpop.f32.mrf.mxu0
          %1796 = vmatprep.mubr.f32.mxu0 0.0
          %1797 = vmatmul.mubr.f32.gmra.mxu0 %v1661
          %v1798 = vpop.f32.mrf.mxu0
          %v1799 = vadd.f32 %v1710, %v1798
          %v1800 = vpop.f32.mrf.mxu0
          %1801 = vmatprep.mubr.f32.mxu0 0.0
          %1802 = vmatmul.mubr.f32.gmra.mxu0 %v1662
          %v1803 = vpop.f32.mrf.mxu0
          %v1804 = vadd.f32 %v1710, %v1803
          %v1805 = vpop.f32.mrf.mxu0
          %1806 = vmatprep.mubr.f32.mxu0 0.0
          %1807 = vmatmul.mubr.f32.gmra.mxu0 %v1663
          %v1808 = vpop.f32.mrf.mxu0
          %v1809 = vadd.f32 %v1710, %v1808
          %v1810 = vpop.f32.mrf.mxu0
          %1811 = vmatprep.mubr.f32.mxu0 0.0
          %1812 = vmatmul.mubr.f32.gmra.mxu0 %v1664
          %v1813 = vpop.f32.mrf.mxu0
          %v1814 = vadd.f32 %v1710, %v1813
          %v1815 = vpop.f32.mrf.mxu0
          %1816 = vmatprep.mubr.f32.mxu0 0.0
          %1817 = vmatmul.mubr.f32.gmra.mxu0 %v1665
          %v1818 = vpop.f32.mrf.mxu0
          %v1819 = vadd.f32 %v1710, %v1818
          %v1820 = vpop.f32.mrf.mxu0
          %1821 = vmatprep.mubr.f32.mxu0 0.0
          %1822 = vmatmul.mubr.f32.gmra.mxu0 %v1666
          %v1823 = vpop.f32.mrf.mxu0
          %v1824 = vadd.f32 %v1710, %v1823
          %v1825 = vpop.f32.mrf.mxu0
          %1826 = vmatprep.mubr.f32.mxu0 0.0
          %1827 = vmatmul.mubr.f32.gmra.mxu0 %v1667
          %v1828 = vpop.f32.mrf.mxu0
          %v1829 = vadd.f32 %v1710, %v1828
          %v1830 = vpop.f32.mrf.mxu0
          %1831 = vmatprep.mubr.f32.mxu0 0.0
          %1832 = vmatmul.mubr.f32.gmra.mxu0 %v1668
          %v1833 = vpop.f32.mrf.mxu0
          %v1834 = vadd.f32 %v1710, %v1833
          %v1835 = vpop.f32.mrf.mxu0
          %1836 = vmatprep.mubr.f32.mxu0 0.0
          %1837 = vmatmul.mubr.f32.gmra.mxu0 %v1669
          %v1838 = vpop.f32.mrf.mxu0
          %v1839 = vadd.f32 %v1710, %v1838
          %v1840 = vpop.f32.mrf.mxu0
          %1841 = vmatprep.mubr.f32.mxu0 0.0
          %1842 = vmatmul.mubr.f32.gmra.mxu0 %v1670
          %v1843 = vpop.f32.mrf.mxu0
          %v1844 = vadd.f32 %v1710, %v1843
          %v1845 = vpop.f32.mrf.mxu0
          %1846 = vmatprep.mubr.f32.mxu0 0.0
          %1847 = vmatmul.mubr.f32.gmra.mxu0 %v1671
          %v1848 = vpop.f32.mrf.mxu0
          %v1849 = vadd.f32 %v1710, %v1848
          %v1850 = vpop.f32.mrf.mxu0
          %1851 = vmatprep.mubr.f32.mxu0 0.0
          %1852 = vmatmul.mubr.f32.gmra.mxu0 %v1672
          %v1853 = vpop.f32.mrf.mxu0
          %v1854 = vadd.f32 %v1710, %v1853
          %v1855 = vpop.f32.mrf.mxu0
          %1856 = vmatprep.mubr.f32.mxu0 0.0
          %1857 = vmatmul.mubr.f32.gmra.mxu0 %v1673
          %v1858 = vpop.f32.mrf.mxu0
          %v1859 = vadd.f32 %v1710, %v1858
          %v1860 = vpop.f32.mrf.mxu0
          %1861 = vmatprep.mubr.f32.mxu0 0.0
          %1862 = vmatmul.mubr.f32.gmra.mxu0 %v1674
          %v1863 = vpop.f32.mrf.mxu0
          %v1864 = vadd.f32 %v1710, %v1863
          %v1865 = vpop.f32.mrf.mxu0
          %1866 = vmatprep.mubr.f32.mxu0 0.0
          %1867 = vmatmul.mubr.f32.gmra.mxu0 %v1675
          %v1868 = vpop.f32.mrf.mxu0
          %v1869 = vadd.f32 %v1710, %v1868
          %v1870 = vpop.f32.mrf.mxu0
          %1871 = vmatprep.mubr.f32.mxu0 0.0
          %1872 = vmatmul.mubr.f32.gmra.mxu0 %v1676
          %v1873 = vpop.f32.mrf.mxu0
          %v1874 = vadd.f32 %v1710, %v1873
          %v1875 = vpop.f32.mrf.mxu0
          %1876 = vmatprep.mubr.f32.mxu0 0.0
          %1877 = vmatmul.mubr.f32.gmra.mxu0 %v1677
          %v1878 = vpop.f32.mrf.mxu0
          %v1879 = vadd.f32 %v1710, %v1878
          %v1880 = vpop.f32.mrf.mxu0
          %1881 = vmatprep.mubr.f32.mxu0 0.0
          %1882 = vmatmul.mubr.f32.gmra.mxu0 %v1678
          %v1883 = vpop.f32.mrf.mxu0
          %v1884 = vadd.f32 %v1710, %v1883
          %v1885 = vpop.f32.mrf.mxu0
          %1886 = vmatprep.mubr.f32.mxu0 0.0
          %1887 = vmatmul.mubr.f32.gmra.mxu0 %v1679
          %v1888 = vpop.f32.mrf.mxu0
          %v1889 = vadd.f32 %v1710, %v1888
          %v1890 = vpop.f32.mrf.mxu0
          %1891 = vmatprep.mubr.f32.mxu0 0.0
          %1892 = vmatmul.mubr.f32.gmra.mxu0 %v1680
          %v1893 = vpop.f32.mrf.mxu0
          %v1894 = vadd.f32 %v1710, %v1893
          %v1895 = vpop.f32.mrf.mxu0
          %1896 = vmatprep.mubr.f32.mxu0 0.0
          %1897 = vmatmul.mubr.f32.gmra.mxu0 %v1681
          %v1898 = vpop.f32.mrf.mxu0
          %v1899 = vadd.f32 %v1710, %v1898
          %v1900 = vpop.f32.mrf.mxu0
          %1901 = vmatprep.mubr.f32.mxu0 0.0
          %1902 = vmatmul.mubr.f32.gmra.mxu0 %v1682
          %v1903 = vpop.f32.mrf.mxu0
          %v1904 = vadd.f32 %v1710, %v1903
          %v1905 = vpop.f32.mrf.mxu0
          %1906 = vmatprep.mubr.f32.mxu0 0.0
          %1907 = vmatmul.mubr.f32.gmra.mxu0 %v1683
          %v1908 = vpop.f32.mrf.mxu0
          %v1909 = vadd.f32 %v1710, %v1908
          %v1910 = vpop.f32.mrf.mxu0
          %1911 = vmatprep.mubr.f32.mxu0 0.0
          %1912 = vmatmul.mubr.f32.gmra.mxu0 %v1684
          %v1913 = vpop.f32.mrf.mxu0
          %v1914 = vadd.f32 %v1710, %v1913
          %v1915 = vpop.f32.mrf.mxu0
          %1916 = vmatprep.mubr.f32.mxu0 0.0
          %1917 = vmatmul.mubr.f32.gmra.mxu0 %v1685
          %v1918 = vpop.f32.mrf.mxu0
          %v1919 = vadd.f32 %v1710, %v1918
          %v1920 = vpop.f32.mrf.mxu0
          %1921 = vmatprep.mubr.f32.mxu0 0.0
          %1922 = vmatmul.mubr.f32.gmra.mxu0 %v1686
          %v1923 = vpop.f32.mrf.mxu0
          %v1924 = vadd.f32 %v1710, %v1923
          %v1925 = vpop.f32.mrf.mxu0
          %1926 = vmatprep.mubr.f32.mxu0 0.0
          %1927 = vmatmul.mubr.f32.gmra.mxu0 %v1687
          %v1928 = vpop.f32.mrf.mxu0
          %v1929 = vadd.f32 %v1710, %v1928
          %v1930 = vpop.f32.mrf.mxu0
          %1931 = vmatprep.mubr.f32.mxu0 0.0
          %1932 = vmatmul.mubr.f32.gmra.mxu0 %v1688
          %v1933 = vpop.f32.mrf.mxu0
          %v1934 = vadd.f32 %v1710, %v1933
          %v1935 = vpop.f32.mrf.mxu0
          %1936 = vdwg.mxu0
          %vm1937 = vcmp.ge.f32.partialorder %v1779, 0.0
          %vm1938 = vcmp.ge.f32.partialorder %v1784, 0.0
          %vm1939 = vcmp.ge.f32.partialorder %v1789, 0.0
          %vm1940 = vcmp.ge.f32.partialorder %v1794, 0.0
          %vm1941 = vcmp.ge.f32.partialorder %v1799, 0.0
          %vm1942 = vcmp.ge.f32.partialorder %v1804, 0.0
          %vm1943 = vcmp.ge.f32.partialorder %v1809, 0.0
          %vm1944 = vcmp.ge.f32.partialorder %v1814, 0.0
          %vm1945 = vcmp.ge.f32.partialorder %v1819, 0.0
          %vm1946 = vcmp.ge.f32.partialorder %v1824, 0.0
          %vm1947 = vcmp.ge.f32.partialorder %v1829, 0.0
          %vm1948 = vcmp.ge.f32.partialorder %v1834, 0.0
          %vm1949 = vcmp.ge.f32.partialorder %v1839, 0.0
          %vm1950 = vcmp.ge.f32.partialorder %v1844, 0.0
          %vm1951 = vcmp.ge.f32.partialorder %v1849, 0.0
          %vm1952 = vcmp.ge.f32.partialorder %v1854, 0.0
          %vm1953 = vcmp.ge.f32.partialorder %v1859, 0.0
          %vm1954 = vcmp.ge.f32.partialorder %v1864, 0.0
          %vm1955 = vcmp.ge.f32.partialorder %v1869, 0.0
          %vm1956 = vcmp.ge.f32.partialorder %v1874, 0.0
          %vm1957 = vcmp.ge.f32.partialorder %v1879, 0.0
          %vm1958 = vcmp.ge.f32.partialorder %v1884, 0.0
          %vm1959 = vcmp.ge.f32.partialorder %v1889, 0.0
          %vm1960 = vcmp.ge.f32.partialorder %v1894, 0.0
          %vm1961 = vcmp.ge.f32.partialorder %v1899, 0.0
          %vm1962 = vcmp.ge.f32.partialorder %v1904, 0.0
          %vm1963 = vcmp.ge.f32.partialorder %v1909, 0.0
          %vm1964 = vcmp.ge.f32.partialorder %v1914, 0.0
          %vm1965 = vcmp.ge.f32.partialorder %v1919, 0.0
          %vm1966 = vcmp.ge.f32.partialorder %v1924, 0.0
          %vm1967 = vcmp.ge.f32.partialorder %v1929, 0.0
          %vm1968 = vcmp.ge.f32.partialorder %v1934, 0.0
          %v1969 = vmul.f32 %v1779, 0.01
          %v1970 = vmul.f32 %v1784, 0.01
          %v1971 = vmul.f32 %v1789, 0.01
          %v1972 = vmul.f32 %v1794, 0.01
          %v1973 = vmul.f32 %v1799, 0.01
          %v1974 = vmul.f32 %v1804, 0.01
          %v1975 = vmul.f32 %v1809, 0.01
          %v1976 = vmul.f32 %v1814, 0.01
          %v1977 = vmul.f32 %v1819, 0.01
          %v1978 = vmul.f32 %v1824, 0.01
          %v1979 = vmul.f32 %v1829, 0.01
          %v1980 = vmul.f32 %v1834, 0.01
          %v1981 = vmul.f32 %v1839, 0.01
          %v1982 = vmul.f32 %v1844, 0.01
          %v1983 = vmul.f32 %v1849, 0.01
          %v1984 = vmul.f32 %v1854, 0.01
          %v1985 = vmul.f32 %v1859, 0.01
          %v1986 = vmul.f32 %v1864, 0.01
          %v1987 = vmul.f32 %v1869, 0.01
          %v1988 = vmul.f32 %v1874, 0.01
          %v1989 = vmul.f32 %v1879, 0.01
          %v1990 = vmul.f32 %v1884, 0.01
          %v1991 = vmul.f32 %v1889, 0.01
          %v1992 = vmul.f32 %v1894, 0.01
          %v1993 = vmul.f32 %v1899, 0.01
          %v1994 = vmul.f32 %v1904, 0.01
          %v1995 = vmul.f32 %v1909, 0.01
          %v1996 = vmul.f32 %v1914, 0.01
          %v1997 = vmul.f32 %v1919, 0.01
          %v1998 = vmul.f32 %v1924, 0.01
          %v1999 = vmul.f32 %v1929, 0.01
          %v2000 = vmul.f32 %v1934, 0.01
          %v2001 = vsel %vm1937, %v1779, %v1969
          %v2002 = vsel %vm1938, %v1784, %v1970
          %v2003 = vsel %vm1939, %v1789, %v1971
          %v2004 = vsel %vm1940, %v1794, %v1972
          %v2005 = vsel %vm1941, %v1799, %v1973
          %v2006 = vsel %vm1942, %v1804, %v1974
          %v2007 = vsel %vm1943, %v1809, %v1975
          %v2008 = vsel %vm1944, %v1814, %v1976
          %v2009 = vsel %vm1945, %v1819, %v1977
          %v2010 = vsel %vm1946, %v1824, %v1978
          %v2011 = vsel %vm1947, %v1829, %v1979
          %v2012 = vsel %vm1948, %v1834, %v1980
          %v2013 = vsel %vm1949, %v1839, %v1981
          %v2014 = vsel %vm1950, %v1844, %v1982
          %v2015 = vsel %vm1951, %v1849, %v1983
          %v2016 = vsel %vm1952, %v1854, %v1984
          %v2017 = vsel %vm1953, %v1859, %v1985
          %v2018 = vsel %vm1954, %v1864, %v1986
          %v2019 = vsel %vm1955, %v1869, %v1987
          %v2020 = vsel %vm1956, %v1874, %v1988
          %v2021 = vsel %vm1957, %v1879, %v1989
          %v2022 = vsel %vm1958, %v1884, %v1990
          %v2023 = vsel %vm1959, %v1889, %v1991
          %v2024 = vsel %vm1960, %v1894, %v1992
          %v2025 = vsel %vm1961, %v1899, %v1993
          %v2026 = vsel %vm1962, %v1904, %v1994
          %v2027 = vsel %vm1963, %v1909, %v1995
          %v2028 = vsel %vm1964, %v1914, %v1996
          %v2029 = vsel %vm1965, %v1919, %v1997
          %v2030 = vsel %vm1966, %v1924, %v1998
          %v2031 = vsel %vm1967, %v1929, %v1999
          %v2032 = vsel %vm1968, %v1934, %v2000
          %2065 = vrot.lane.b32.xlu0 %v2001, 64
          %v2066 = vpop.permute.xlu0 %2065
          %2067 = vrot.lane.b32.xlu0 %v2002, 64
          %v2068 = vpop.permute.xlu0 %2067
          %2069 = vrot.lane.b32.xlu0 %v2003, 64
          %v2070 = vpop.permute.xlu0 %2069
          %2071 = vrot.lane.b32.xlu0 %v2004, 64
          %v2072 = vpop.permute.xlu0 %2071
          %2073 = vrot.lane.b32.xlu0 %v2005, 64
          %v2074 = vpop.permute.xlu0 %2073
          %2075 = vrot.lane.b32.xlu0 %v2006, 64
          %v2076 = vpop.permute.xlu0 %2075
          %2077 = vrot.lane.b32.xlu0 %v2007, 64
          %v2078 = vpop.permute.xlu0 %2077
          %2079 = vrot.lane.b32.xlu0 %v2008, 64
          %v2080 = vpop.permute.xlu0 %2079
          %2081 = vrot.lane.b32.xlu0 %v2009, 64
          %v2082 = vpop.permute.xlu0 %2081
          %2083 = vrot.lane.b32.xlu0 %v2010, 64
          %v2084 = vpop.permute.xlu0 %2083
          %2085 = vrot.lane.b32.xlu0 %v2011, 64
          %v2086 = vpop.permute.xlu0 %2085
          %2087 = vrot.lane.b32.xlu0 %v2012, 64
          %v2088 = vpop.permute.xlu0 %2087
          %2089 = vrot.lane.b32.xlu0 %v2013, 64
          %v2090 = vpop.permute.xlu0 %2089
          %2091 = vrot.lane.b32.xlu0 %v2014, 64
          %v2092 = vpop.permute.xlu0 %2091
          %2093 = vrot.lane.b32.xlu0 %v2015, 64
          %v2094 = vpop.permute.xlu0 %2093
          %2095 = vrot.lane.b32.xlu0 %v2016, 64
          %v2096 = vpop.permute.xlu0 %2095
          %2097 = vrot.lane.b32.xlu0 %v2017, 64
          %v2098 = vpop.permute.xlu0 %2097
          %2099 = vrot.lane.b32.xlu0 %v2018, 64
          %v2100 = vpop.permute.xlu0 %2099
          %2101 = vrot.lane.b32.xlu0 %v2019, 64
          %v2102 = vpop.permute.xlu0 %2101
          %2103 = vrot.lane.b32.xlu0 %v2020, 64
          %v2104 = vpop.permute.xlu0 %2103
          %2105 = vrot.lane.b32.xlu0 %v2021, 64
          %v2106 = vpop.permute.xlu0 %2105
          %2107 = vrot.lane.b32.xlu0 %v2022, 64
          %v2108 = vpop.permute.xlu0 %2107
          %2109 = vrot.lane.b32.xlu0 %v2023, 64
          %v2110 = vpop.permute.xlu0 %2109
          %2111 = vrot.lane.b32.xlu0 %v2024, 64
          %v2112 = vpop.permute.xlu0 %2111
          %2113 = vrot.lane.b32.xlu0 %v2025, 64
          %v2114 = vpop.permute.xlu0 %2113
          %2115 = vrot.lane.b32.xlu0 %v2026, 64
          %v2116 = vpop.permute.xlu0 %2115
          %2117 = vrot.lane.b32.xlu0 %v2027, 64
          %v2118 = vpop.permute.xlu0 %2117
          %2119 = vrot.lane.b32.xlu0 %v2028, 64
          %v2120 = vpop.permute.xlu0 %2119
          %2121 = vrot.lane.b32.xlu0 %v2029, 64
          %v2122 = vpop.permute.xlu0 %2121
          %2123 = vrot.lane.b32.xlu0 %v2030, 64
          %v2124 = vpop.permute.xlu0 %2123
          %2125 = vrot.lane.b32.xlu0 %v2031, 64
          %v2126 = vpop.permute.xlu0 %2125
          %2127 = vrot.lane.b32.xlu0 %v2032, 64
          %v2128 = vpop.permute.xlu0 %2127
          %v2161 = vsel %vm1365, %v1401, %v2066
          %v2162 = vsel %vm1365, %v1402, %v2068
          %v2163 = vsel %vm1365, %v1403, %v2070
          %v2164 = vsel %vm1365, %v1404, %v2072
          %v2165 = vsel %vm1365, %v1405, %v2074
          %v2166 = vsel %vm1365, %v1406, %v2076
          %v2167 = vsel %vm1365, %v1407, %v2078
          %v2168 = vsel %vm1365, %v1408, %v2080
          %v2169 = vsel %vm1365, %v1409, %v2082
          %v2170 = vsel %vm1365, %v1410, %v2084
          %v2171 = vsel %vm1365, %v1411, %v2086
          %v2172 = vsel %vm1365, %v1412, %v2088
          %v2173 = vsel %vm1365, %v1413, %v2090
          %v2174 = vsel %vm1365, %v1414, %v2092
          %v2175 = vsel %vm1365, %v1415, %v2094
          %v2176 = vsel %vm1365, %v1416, %v2096
          %v2177 = vsel %vm1365, %v1417, %v2098
          %v2178 = vsel %vm1365, %v1418, %v2100
          %v2179 = vsel %vm1365, %v1419, %v2102
          %v2180 = vsel %vm1365, %v1420, %v2104
          %v2181 = vsel %vm1365, %v1421, %v2106
          %v2182 = vsel %vm1365, %v1422, %v2108
          %v2183 = vsel %vm1365, %v1423, %v2110
          %v2184 = vsel %vm1365, %v1424, %v2112
          %v2185 = vsel %vm1365, %v1425, %v2114
          %v2186 = vsel %vm1365, %v1426, %v2116
          %v2187 = vsel %vm1365, %v1427, %v2118
          %v2188 = vsel %vm1365, %v1428, %v2120
          %v2189 = vsel %vm1365, %v1429, %v2122
          %v2190 = vsel %vm1365, %v1430, %v2124
          %v2191 = vsel %vm1365, %v1431, %v2126
          %v2192 = vsel %vm1365, %v1432, %v2128
          %2193 = vst [vmem:[%s275] sm:$0xff] %v2161
          %2194 = vst [vmem:[%s275 + $0x8] sm:$0xff] %v2162
          %2195 = vst [vmem:[%s275 + $0x10] sm:$0xff] %v2163
          %2196 = vst [vmem:[%s275 + $0x18] sm:$0xff] %v2164
          %2197 = vst [vmem:[%s275 + $0x20] sm:$0xff] %v2165
          %2198 = vst [vmem:[%s275 + $0x28] sm:$0xff] %v2166
          %2199 = vst [vmem:[%s275 + $0x30] sm:$0xff] %v2167
          %2200 = vst [vmem:[%s275 + $0x38] sm:$0xff] %v2168
          %2201 = vst [vmem:[%s275 + $0x40] sm:$0xff] %v2169
          %2202 = vst [vmem:[%s275 + $0x48] sm:$0xff] %v2170
          %2203 = vst [vmem:[%s275 + $0x50] sm:$0xff] %v2171
          %2204 = vst [vmem:[%s275 + $0x58] sm:$0xff] %v2172
          %2205 = vst [vmem:[%s275 + $0x60] sm:$0xff] %v2173
          %2206 = vst [vmem:[%s275 + $0x68] sm:$0xff] %v2174
          %2207 = vst [vmem:[%s275 + $0x70] sm:$0xff] %v2175
          %2208 = vst [vmem:[%s275 + $0x78] sm:$0xff] %v2176
          %2209 = vst [vmem:[%s275 + $0x80] sm:$0xff] %v2177
          %2210 = vst [vmem:[%s275 + $0x88] sm:$0xff] %v2178
          %2211 = vst [vmem:[%s275 + $0x90] sm:$0xff] %v2179
          %2212 = vst [vmem:[%s275 + $0x98] sm:$0xff] %v2180
          %2213 = vst [vmem:[%s275 + $0xa0] sm:$0xff] %v2181
          %2214 = vst [vmem:[%s275 + $0xa8] sm:$0xff] %v2182
          %2215 = vst [vmem:[%s275 + $0xb0] sm:$0xff] %v2183
          %2216 = vst [vmem:[%s275 + $0xb8] sm:$0xff] %v2184
          %2217 = vst [vmem:[%s275 + $0xc0] sm:$0xff] %v2185
          %2218 = vst [vmem:[%s275 + $0xc8] sm:$0xff] %v2186
          %2219 = vst [vmem:[%s275 + $0xd0] sm:$0xff] %v2187
          %2220 = vst [vmem:[%s275 + $0xd8] sm:$0xff] %v2188
          %2221 = vst [vmem:[%s275 + $0xe0] sm:$0xff] %v2189
          %2222 = vst [vmem:[%s275 + $0xe8] sm:$0xff] %v2190
          %2223 = vst [vmem:[%s275 + $0xf0] sm:$0xff] %v2191
          %2224 = vst [vmem:[%s275 + $0xf8] sm:$0xff] %v2192
        $region48: #{tpu_custom_call.1} parent=39 // pred_fallthru
          _
        %s2225 = sand.u32 %s161, 1
        %s2226 = scalar_lea.sflag [#allocation4], %s2225
        %s2227 = sand.u32 %s161, 1
        %s2228 = smul.addr %s2227, 256
        %s2229 = scalar_lea.vmem [#allocation3], %s2228
        // Predicated region
        $region49: #{tpu_custom_call.1} parent=39 // pred_check
          %p2230 = pneg %p171
        $region50: #{tpu_custom_call.1} parent=39 // pred_check_branch
          %2232 = sbr.rel (%p2230) target = $region52
        $region51: #{tpu_custom_call.1} parent=39 // pred_region
          %s2233 = smul.u32 32, %s23
          %s2235 = ssub.s32 4096, 4096
          %2236 = vsyncadd %s2226, %s2235
          %s2237 = smul.addr %s2233, 128
          %s2238 = scalar_lea.hbm %s5, %s2237
          %s2239 = sshll.u32 %s2229, 4
          %s2240 = int_to_ptr.vmem [resolvable:$true] %s2239
          %2245 = dma.vmem_to_hbm [thread:$0]  %s2240, 4096, %s2238, %s2226, 128, 128, 8
        $region52: #{tpu_custom_call.1} parent=39 // pred_fallthru
          _
      $region40: #{tpu_custom_call.1} parent=5 // pred_fallthru
        _
      %p2246 = scmp.le.s32.totalorder 2, %s14
      // Predicated region
      $region53: #{tpu_custom_call.1} parent=5 // pred_check
        %p2247 = pneg %p2246
      $region54: #{tpu_custom_call.1} parent=5 // pred_check_branch
        %2249 = sbr.rel (%p2247) target = $region56
      $region55: #{tpu_custom_call.1} parent=5 // pred_region
        %s2250 = ssub.s32 %s14, 2
        // Predicated region
        $region57: #{tpu_custom_call.1} parent=55 // pred_check
          %p2251 = pneg %p177
        $region58: #{tpu_custom_call.1} parent=55 // pred_check_branch
          %2253 = sbr.rel (%p2251) target = $region60
        $region59: #{tpu_custom_call.1} parent=55 // pred_region
          %s2254 = sand.u32 %s162, 1
          %s2255 = scalar_lea.sflag [#allocation4], %s2254
          %s2256 = sand.u32 %s162, 1
          %s2257 = smul.addr %s2256, 256
          %s2258 = scalar_lea.vmem [#allocation3], %s2257
          %2259 = dma.done %s2255, 4096
        $region60: #{tpu_custom_call.1} parent=55 // pred_fallthru
          _
      $region56: #{tpu_custom_call.1} parent=5 // pred_fallthru
        _
    $region6: #{tpu_custom_call.1} parent=1 // loop_footer
      %s18 = sadd.s32 1, %s14
    $region7: #{tpu_custom_call.1} parent=1 // loop_footer_branch
      %13 = sbr.rel target = $region3
    $region8: #{tpu_custom_call.1} parent=1 // loop_exit
      _
    %2260 = vsyncpa [#allocation4], 1
    %s2261 = scalar_lea.sflag [#allocation4], 1
    %2262 = vsyncpa %s2261, 1

</llo_original>
